<compile_context>
chip_gen: v6e
topology: v6e:2x2x1
jax: 0.10.0
libtpu: 0.0.40
codegen_flags: <defaults>
</compile_context>

<pallas_src>
import functools

import jax
import jax.numpy as jnp
from jax import lax
from jax.experimental import pallas as pl
from jax.experimental.pallas import tpu as pltpu


# --------------------------------------------------------------------------
# Fused 3x3 conv (+ folded BatchNorm + optional ReLU) kernel
# --------------------------------------------------------------------------

def _conv3x3_kernel(xs_ref, w_ref, scale_ref, bias_ref, o_ref, *, apply_relu):
    # xs_ref   : (9, 1, Cin, T)   -- 9 shifted input taps for this (batch, HW-tile)
    # w_ref    : (9, Cout, Cin)
    # scale_ref: (Cout, 1)        -- folded BN scale (ones for the final conv)
    # bias_ref : (Cout, 1)        -- conv bias folded with BN shift
    # o_ref    : (1, Cout, T)     -- lane-dense output tile
    acc = jnp.dot(w_ref[0], xs_ref[0, 0], preferred_element_type=jnp.float32)
    for k in range(1, 9):
        acc = acc + jnp.dot(w_ref[k], xs_ref[k, 0],
                            preferred_element_type=jnp.float32)
    y = acc * scale_ref[...] + bias_ref[...]
    if apply_relu:
        y = jnp.maximum(y, 0.0)
    o_ref[0] = y.astype(o_ref.dtype)


def _shift_patches(x):
    """(B, C, H, W) -> (9, B, C, H*W): the nine 3x3-tap shifted views (padding=1)."""
    B, C, H, W = x.shape
    xp = jnp.pad(x, ((0, 0), (0, 0), (1, 1), (1, 1)))
    taps = [xp[:, :, dy:dy + H, dx:dx + W].reshape(B, C, H * W)
            for dy in range(3) for dx in range(3)]
    return jnp.stack(taps, axis=0)


def conv3x3(x, w, scale, bias, *, apply_relu, max_tile_hw=1024):
    """3x3 conv, padding=1, stride=1, with folded per-channel scale/bias (+ReLU)."""
    B, Cin, H, W = x.shape
    Cout = w.shape[0]
    HW = H * W

    xs = _shift_patches(x)                                     # (9, B, Cin, HW)
    wk = jnp.transpose(w, (2, 3, 0, 1)).reshape(9, Cout, Cin)  # (9, Cout, Cin)
    scale2 = scale.reshape(Cout, 1)
    bias2 = bias.reshape(Cout, 1)

    # Lane-dense HW tile: multiple of 128 (or the full extent), VMEM-budgeted so
    # 2x double-buffered input tiles stay far below every generation's scoped VMEM.
    if HW > max_tile_hw and HW % max_tile_hw == 0:
        T = max_tile_hw
    else:
        T = HW
    grid = (B, HW // T)

    out = pl.pallas_call(
        functools.partial(_conv3x3_kernel, apply_relu=apply_relu),
        out_shape=jax.ShapeDtypeStruct((B, Cout, HW), jnp.float32),
        grid_spec=pltpu.PrefetchScalarGridSpec(
            num_scalar_prefetch=0,
            grid=grid,
            in_specs=[
                pl.BlockSpec((9, 1, Cin, T), lambda b, t: (0, b, 0, t)),
                pl.BlockSpec((9, Cout, Cin), lambda b, t: (0, 0, 0)),
                pl.BlockSpec((Cout, 1), lambda b, t: (0, 0)),
                pl.BlockSpec((Cout, 1), lambda b, t: (0, 0)),
            ],
            out_specs=pl.BlockSpec((1, Cout, T), lambda b, t: (b, 0, t)),
        ),
        compiler_params=pltpu.CompilerParams(
            dimension_semantics=("parallel", "parallel")),
    )(xs, wk, scale2, bias2)
    return out.reshape(B, Cout, H, W)


# --------------------------------------------------------------------------
# Fused PlainHead + ProbHead kernel (both heads in one pallas_call)
# --------------------------------------------------------------------------

def _heads_kernel(feat_ref, xfeat_ref, ws_ref, bs_ref, wp_ref, bp_ref,
                  score_ref, prob_ref, *, topk):
    # feat_ref : (B, Cf, HWf)   ws_ref: (Cf, 1)   bs_ref: (1, 1)
    # xfeat_ref: (B, Cx, HWx)   wp_ref: (Cx, 1)   bp_ref: (1, 1)
    # score_ref: (B, 1)         prob_ref: (B, 1)
    batch = feat_ref.shape[0]
    hwf = feat_ref.shape[2]
    iota = lax.broadcasted_iota(jnp.int32, (1, hwf), 1)
    inv_k = 1.0 / topk

    scores, probs = [], []
    for b in range(batch):   # B is tiny; trace-time unrolled, all ops are 2-D.
        # PlainHead scoring: 1x1 conv (in_c -> 1) as VPU multiply + sublane reduce
        # (avoids a degenerate N=1 MXU matmul).
        s = jnp.sum(feat_ref[b] * ws_ref[...], axis=0, keepdims=True) + bs_ref[...]
        vals = jnp.abs(s)                                       # (1, HWf)

        # top-k(|score|) mean via iterative masked max (first occurrence masked,
        # so duplicates are handled like torch.topk).
        def body(_, carry):
            v, acc = carry
            m = jnp.max(v, axis=1, keepdims=True)               # (1, 1)
            first = jnp.min(jnp.where(v == m, iota, hwf), axis=1, keepdims=True)
            v = jnp.where(iota == first, -jnp.inf, v)
            return v, acc + m

        _, acc = lax.fori_loop(0, topk, body,
                               (vals, jnp.zeros((1, 1), jnp.float32)))
        scores.append(acc * inv_k)

        # ProbHead: global avg-pool (lane reduce) + Linear(in_dim, 1) as multiply +
        # sublane reduce + sigmoid (EUP).
        pooled = jnp.mean(xfeat_ref[b], axis=1, keepdims=True)  # (Cx, 1)
        logit = jnp.sum(pooled * wp_ref[...], axis=0, keepdims=True) + bp_ref[...]
        probs.append(jax.nn.sigmoid(logit))

    score_ref[...] = jnp.concatenate(scores, axis=0).astype(score_ref.dtype)
    prob_ref[...] = jnp.concatenate(probs, axis=0).astype(prob_ref.dtype)


def heads_forward(feature, x_feature, w_score, b_score, w_fc, b_fc, *, topk_rate):
    B, Cf, Hf, Wf = feature.shape
    _, Cx, Hx, Wx = x_feature.shape
    hwf, hwx = Hf * Wf, Hx * Wx
    topk = max(int(hwf * topk_rate), 1)

    feat = feature.reshape(B, Cf, hwf)
    xf = x_feature.reshape(B, Cx, hwx)

    score, prob = pl.pallas_call(
        functools.partial(_heads_kernel, topk=topk),
        out_shape=(jax.ShapeDtypeStruct((B, 1), jnp.float32),
                   jax.ShapeDtypeStruct((B, 1), jnp.float32)),
        in_specs=[
            pl.BlockSpec((B, Cf, hwf), lambda: (0, 0, 0)),
            pl.BlockSpec((B, Cx, hwx), lambda: (0, 0, 0)),
            pl.BlockSpec((Cf, 1), lambda: (0, 0)),
            pl.BlockSpec((1, 1), lambda: (0, 0)),
            pl.BlockSpec((Cx, 1), lambda: (0, 0)),
            pl.BlockSpec((1, 1), lambda: (0, 0)),
        ],
        out_specs=(pl.BlockSpec((B, 1), lambda: (0, 0)),
                   pl.BlockSpec((B, 1), lambda: (0, 0))),
    )(feat, xf, w_score.reshape(Cf, 1), jnp.reshape(b_score, (1, 1)),
      w_fc.reshape(Cx, 1), jnp.reshape(b_fc, (1, 1)))
    return score, prob


# --------------------------------------------------------------------------
# SemiADNet forward (decoder + heads)
# --------------------------------------------------------------------------

def semiadnet_forward(feature, x_feature, params, *, topk_rate):
    # TODO(synk): the backbone feature_extractor is external; (feature, x_feature)
    # are its outputs and are taken as inputs here.
    x = feature
    # db1: conv-BN-ReLU x2
    x = conv3x3(x, params['db1_w1'], params['db1_s1'], params['db1_b1'], apply_relu=True)
    x = conv3x3(x, params['db1_w2'], params['db1_s2'], params['db1_b2'], apply_relu=True)
    # up1..up3: nearest x2 upsample (layout, wrapper-side) + conv-BN-ReLU kernel
    for i in (1, 2, 3):
        x = jnp.repeat(jnp.repeat(x, 2, axis=2), 2, axis=3)
        x = conv3x3(x, params[f'up{i}_w'], params[f'up{i}_s'], params[f'up{i}_b'],
                    apply_relu=True)
    # fin_out: plain conv (scale=1, bias=conv bias, no ReLU)
    out_mask = conv3x3(x, params['fin_w'], params['fin_s'], params['fin_b'],
                       apply_relu=False)

    abnormal_scores, prob = heads_forward(
        feature, x_feature,
        params['score_w'], params['score_b'],
        params['fc_w'], params['fc_b'],
        topk_rate=topk_rate)
    return out_mask, abnormal_scores, prob


# --------------------------------------------------------------------------
# Pure-JAX reference (eval-mode BN folded identically)
# --------------------------------------------------------------------------

def _reference_forward(feature, x_feature, params, topk_rate):
    def conv_ref(x, w, scale, bias, relu):
        y = lax.conv_general_dilated(
            x, w, window_strides=(1, 1), padding='SAME',
            dimension_numbers=('NCHW', 'OIHW', 'NCHW'),
            precision=lax.Precision.HIGHEST)
        y = y * scale[None, :, None, None] + bias[None, :, None, None]
        return jnp.maximum(y, 0.0) if relu else y

    x = conv_ref(feature, params['db1_w1'], params['db1_s1'], params['db1_b1'], True)
    x = conv_ref(x, params['db1_w2'], params['db1_s2'], params['db1_b2'], True)
    for i in (1, 2, 3):
        x = jnp.repeat(jnp.repeat(x, 2, axis=2), 2, axis=3)
        x = conv_ref(x, params[f'up{i}_w'], params[f'up{i}_s'], params[f'up{i}_b'], True)
    out_mask = conv_ref(x, params['fin_w'], params['fin_s'], params['fin_b'], False)

    B = feature.shape[0]
    s = jnp.sum(feature * params['score_w'][None, :, None, None], axis=1) + params['score_b']
    s = jnp.abs(s.reshape(B, -1))
    k = max(int(s.shape[1] * topk_rate), 1)
    topv, _ = lax.top_k(s, k)
    abnormal_scores = jnp.mean(topv, axis=1, keepdims=True)

    pooled = jnp.mean(x_feature, axis=(2, 3))
    logit = jnp.sum(pooled * params['fc_w'][None, :], axis=1, keepdims=True) + params['fc_b']
    prob = jax.nn.sigmoid(logit)
    return out_mask, abnormal_scores, prob


# --------------------------------------------------------------------------

if __name__ == "__main__":
    key = jax.random.PRNGKey(0)
    B = 2
    net_out_dim = 16                                     # toy NET_OUT_DIM[backbone]
    in_c = net_out_dim + net_out_dim // 2 + net_out_dim // 4   # 28
    base_width, out_channel = 64, 2
    Hf = Wf = 8                                          # toy feature-map spatial size
    topk_rate = 0.1
    eps = 1e-5

    keys = iter(jax.random.split(key, 64))

    def nrm(shape, scale=0.05):
        return jax.random.normal(next(keys), shape, dtype=jnp.float32) * scale

    feature = jax.random.normal(next(keys), (B, in_c, Hf, Wf), dtype=jnp.float32)
    x_feature = jax.random.normal(next(keys), (B, net_out_dim, Hf, Wf), dtype=jnp.float32)

    def conv_bn(cin, cout):
        w = nrm((cout, cin, 3, 3))
        b_conv = nrm((cout,))
        gamma = 1.0 + nrm((cout,), 0.1)
        beta = nrm((cout,), 0.1)
        mean = nrm((cout,), 0.1)
        var = jax.random.uniform(next(keys), (cout,), minval=0.5, maxval=1.5)
        scale = gamma / jnp.sqrt(var + eps)
        bias = (b_conv - mean) * scale + beta
        return w, scale, bias

    params = {}
    params['db1_w1'], params['db1_s1'], params['db1_b1'] = conv_bn(in_c, base_width)
    params['db1_w2'], params['db1_s2'], params['db1_b2'] = conv_bn(base_width, base_width)
    for i in (1, 2, 3):
        params[f'up{i}_w'], params[f'up{i}_s'], params[f'up{i}_b'] = conv_bn(base_width, base_width)
    params['fin_w'] = nrm((out_channel, base_width, 3, 3))
    params['fin_s'] = jnp.ones((out_channel,), jnp.float32)
    params['fin_b'] = nrm((out_channel,))
    params['score_w'] = nrm((in_c,), 0.1)        # PlainHead 1x1 conv weight, squeezed
    params['score_b'] = nrm((1,), 0.1)
    params['fc_w'] = nrm((net_out_dim,), 0.1)    # ProbHead Linear(in_dim, 1) weight
    params['fc_b'] = nrm((1,), 0.1)

    out_mask, abnormal_scores, prob = semiadnet_forward(
        feature, x_feature, params, topk_rate=topk_rate)
    jax.block_until_ready((out_mask, abnormal_scores, prob))

    ref_mask, ref_scores, ref_prob = _reference_forward(feature, x_feature, params, topk_rate)

    assert out_mask.shape == (B, out_channel, Hf * 8, Wf * 8)
    assert abnormal_scores.shape == (B, 1) and prob.shape == (B, 1)
    assert jnp.allclose(out_mask, ref_mask, atol=2e-3, rtol=2e-3)
    assert jnp.allclose(abnormal_scores, ref_scores, atol=1e-4, rtol=1e-4)
    assert jnp.allclose(prob, ref_prob, atol=1e-4, rtol=1e-4)

    print("KERNEL_OK")
</pallas_src>

<mosaic_0001>
module attributes {stable_mosaic.version = 11 : i64} {
  func.func @_conv3x3_kernel(%arg0: i32, %arg1: i32, %arg2: memref<9x1x28x64xf32, #tpu.memory_space<vmem>>, %arg3: memref<9x64x28xf32, #tpu.memory_space<vmem>>, %arg4: memref<64x1xf32, #tpu.memory_space<vmem>>, %arg5: memref<64x1xf32, #tpu.memory_space<vmem>>, %arg6: memref<1x64x64xf32, #tpu.memory_space<vmem>>) attributes {dimension_semantics = [#tpu.dimension_semantics<parallel>, #tpu.dimension_semantics<parallel>], iteration_bounds = array<i64: 2, 1>, scalar_prefetch = 0 : i64, scratch_operands = 0 : i64, tpu.core_type = #tpu.core_type<tc>, window_params = [{transform_indices = @transform_0, window_bounds = array<i64: 9, 1, 28, 64>}, {pipeline_mode = #tpu.pipeline_mode<synchronous>, transform_indices = @transform_1, window_bounds = array<i64: 9, 64, 28>}, {pipeline_mode = #tpu.pipeline_mode<synchronous>, transform_indices = @transform_2, window_bounds = array<i64: 64, 1>}, {pipeline_mode = #tpu.pipeline_mode<synchronous>, transform_indices = @transform_3, window_bounds = array<i64: 64, 1>}, {transform_indices = @transform_4, window_bounds = array<i64: 1, 64, 64>}]} {
    %c0 = arith.constant 0 : index
    %c0_0 = arith.constant 0 : index
    %c0_1 = arith.constant 0 : index
    %0 = vector.load %arg3[%c0, %c0_0, %c0_1] : memref<9x64x28xf32, #tpu.memory_space<vmem>>, vector<1x64x28xf32>
    %1 = vector.shape_cast %0 : vector<1x64x28xf32> to vector<64x28xf32>
    %c0_2 = arith.constant 0 : index
    %c0_3 = arith.constant 0 : index
    %c0_4 = arith.constant 0 : index
    %c0_5 = arith.constant 0 : index
    %2 = vector.load %arg2[%c0_2, %c0_3, %c0_4, %c0_5] : memref<9x1x28x64xf32, #tpu.memory_space<vmem>>, vector<1x1x28x64xf32>
    %3 = vector.shape_cast %2 : vector<1x1x28x64xf32> to vector<28x64xf32>
    %cst = arith.constant dense<0.000000e+00> : vector<64x64xf32>
    %4 = tpu.matmul %1, %3, %cst {dimension_numbers = #tpu.dot_dimension_numbers<[1], [0], [0], [1], [0, 0, 1, 1], [], []>} : vector<64x28xf32>, vector<28x64xf32>, vector<64x64xf32> -> vector<64x64xf32>
    %c1 = arith.constant 1 : index
    %c0_6 = arith.constant 0 : index
    %c0_7 = arith.constant 0 : index
    %5 = vector.load %arg3[%c1, %c0_6, %c0_7] : memref<9x64x28xf32, #tpu.memory_space<vmem>>, vector<1x64x28xf32>
    %6 = vector.shape_cast %5 : vector<1x64x28xf32> to vector<64x28xf32>
    %c1_8 = arith.constant 1 : index
    %c0_9 = arith.constant 0 : index
    %c0_10 = arith.constant 0 : index
    %c0_11 = arith.constant 0 : index
    %7 = vector.load %arg2[%c1_8, %c0_9, %c0_10, %c0_11] : memref<9x1x28x64xf32, #tpu.memory_space<vmem>>, vector<1x1x28x64xf32>
    %8 = vector.shape_cast %7 : vector<1x1x28x64xf32> to vector<28x64xf32>
    %cst_12 = arith.constant dense<0.000000e+00> : vector<64x64xf32>
    %9 = tpu.matmul %6, %8, %cst_12 {dimension_numbers = #tpu.dot_dimension_numbers<[1], [0], [0], [1], [0, 0, 1, 1], [], []>} : vector<64x28xf32>, vector<28x64xf32>, vector<64x64xf32> -> vector<64x64xf32>
    %10 = arith.addf %4, %9 : vector<64x64xf32>
    %c2 = arith.constant 2 : index
    %c0_13 = arith.constant 0 : index
    %c0_14 = arith.constant 0 : index
    %11 = vector.load %arg3[%c2, %c0_13, %c0_14] : memref<9x64x28xf32, #tpu.memory_space<vmem>>, vector<1x64x28xf32>
    %12 = vector.shape_cast %11 : vector<1x64x28xf32> to vector<64x28xf32>
    %c2_15 = arith.constant 2 : index
    %c0_16 = arith.constant 0 : index
    %c0_17 = arith.constant 0 : index
    %c0_18 = arith.constant 0 : index
    %13 = vector.load %arg2[%c2_15, %c0_16, %c0_17, %c0_18] : memref<9x1x28x64xf32, #tpu.memory_space<vmem>>, vector<1x1x28x64xf32>
    %14 = vector.shape_cast %13 : vector<1x1x28x64xf32> to vector<28x64xf32>
    %cst_19 = arith.constant dense<0.000000e+00> : vector<64x64xf32>
    %15 = tpu.matmul %12, %14, %cst_19 {dimension_numbers = #tpu.dot_dimension_numbers<[1], [0], [0], [1], [0, 0, 1, 1], [], []>} : vector<64x28xf32>, vector<28x64xf32>, vector<64x64xf32> -> vector<64x64xf32>
    %16 = arith.addf %10, %15 : vector<64x64xf32>
    %c3 = arith.constant 3 : index
    %c0_20 = arith.constant 0 : index
    %c0_21 = arith.constant 0 : index
    %17 = vector.load %arg3[%c3, %c0_20, %c0_21] : memref<9x64x28xf32, #tpu.memory_space<vmem>>, vector<1x64x28xf32>
    %18 = vector.shape_cast %17 : vector<1x64x28xf32> to vector<64x28xf32>
    %c3_22 = arith.constant 3 : index
    %c0_23 = arith.constant 0 : index
    %c0_24 = arith.constant 0 : index
    %c0_25 = arith.constant 0 : index
    %19 = vector.load %arg2[%c3_22, %c0_23, %c0_24, %c0_25] : memref<9x1x28x64xf32, #tpu.memory_space<vmem>>, vector<1x1x28x64xf32>
    %20 = vector.shape_cast %19 : vector<1x1x28x64xf32> to vector<28x64xf32>
    %cst_26 = arith.constant dense<0.000000e+00> : vector<64x64xf32>
    %21 = tpu.matmul %18, %20, %cst_26 {dimension_numbers = #tpu.dot_dimension_numbers<[1], [0], [0], [1], [0, 0, 1, 1], [], []>} : vector<64x28xf32>, vector<28x64xf32>, vector<64x64xf32> -> vector<64x64xf32>
    %22 = arith.addf %16, %21 : vector<64x64xf32>
    %c4 = arith.constant 4 : index
    %c0_27 = arith.constant 0 : index
    %c0_28 = arith.constant 0 : index
    %23 = vector.load %arg3[%c4, %c0_27, %c0_28] : memref<9x64x28xf32, #tpu.memory_space<vmem>>, vector<1x64x28xf32>
    %24 = vector.shape_cast %23 : vector<1x64x28xf32> to vector<64x28xf32>
    %c4_29 = arith.constant 4 : index
    %c0_30 = arith.constant 0 : index
    %c0_31 = arith.constant 0 : index
    %c0_32 = arith.constant 0 : index
    %25 = vector.load %arg2[%c4_29, %c0_30, %c0_31, %c0_32] : memref<9x1x28x64xf32, #tpu.memory_space<vmem>>, vector<1x1x28x64xf32>
    %26 = vector.shape_cast %25 : vector<1x1x28x64xf32> to vector<28x64xf32>
    %cst_33 = arith.constant dense<0.000000e+00> : vector<64x64xf32>
    %27 = tpu.matmul %24, %26, %cst_33 {dimension_numbers = #tpu.dot_dimension_numbers<[1], [0], [0], [1], [0, 0, 1, 1], [], []>} : vector<64x28xf32>, vector<28x64xf32>, vector<64x64xf32> -> vector<64x64xf32>
    %28 = arith.addf %22, %27 : vector<64x64xf32>
    %c5 = arith.constant 5 : index
    %c0_34 = arith.constant 0 : index
    %c0_35 = arith.constant 0 : index
    %29 = vector.load %arg3[%c5, %c0_34, %c0_35] : memref<9x64x28xf32, #tpu.memory_space<vmem>>, vector<1x64x28xf32>
    %30 = vector.shape_cast %29 : vector<1x64x28xf32> to vector<64x28xf32>
    %c5_36 = arith.constant 5 : index
    %c0_37 = arith.constant 0 : index
    %c0_38 = arith.constant 0 : index
    %c0_39 = arith.constant 0 : index
    %31 = vector.load %arg2[%c5_36, %c0_37, %c0_38, %c0_39] : memref<9x1x28x64xf32, #tpu.memory_space<vmem>>, vector<1x1x28x64xf32>
    %32 = vector.shape_cast %31 : vector<1x1x28x64xf32> to vector<28x64xf32>
    %cst_40 = arith.constant dense<0.000000e+00> : vector<64x64xf32>
    %33 = tpu.matmul %30, %32, %cst_40 {dimension_numbers = #tpu.dot_dimension_numbers<[1], [0], [0], [1], [0, 0, 1, 1], [], []>} : vector<64x28xf32>, vector<28x64xf32>, vector<64x64xf32> -> vector<64x64xf32>
    %34 = arith.addf %28, %33 : vector<64x64xf32>
    %c6 = arith.constant 6 : index
    %c0_41 = arith.constant 0 : index
    %c0_42 = arith.constant 0 : index
    %35 = vector.load %arg3[%c6, %c0_41, %c0_42] : memref<9x64x28xf32, #tpu.memory_space<vmem>>, vector<1x64x28xf32>
    %36 = vector.shape_cast %35 : vector<1x64x28xf32> to vector<64x28xf32>
    %c6_43 = arith.constant 6 : index
    %c0_44 = arith.constant 0 : index
    %c0_45 = arith.constant 0 : index
    %c0_46 = arith.constant 0 : index
    %37 = vector.load %arg2[%c6_43, %c0_44, %c0_45, %c0_46] : memref<9x1x28x64xf32, #tpu.memory_space<vmem>>, vector<1x1x28x64xf32>
    %38 = vector.shape_cast %37 : vector<1x1x28x64xf32> to vector<28x64xf32>
    %cst_47 = arith.constant dense<0.000000e+00> : vector<64x64xf32>
    %39 = tpu.matmul %36, %38, %cst_47 {dimension_numbers = #tpu.dot_dimension_numbers<[1], [0], [0], [1], [0, 0, 1, 1], [], []>} : vector<64x28xf32>, vector<28x64xf32>, vector<64x64xf32> -> vector<64x64xf32>
    %40 = arith.addf %34, %39 : vector<64x64xf32>
    %c7 = arith.constant 7 : index
    %c0_48 = arith.constant 0 : index
    %c0_49 = arith.constant 0 : index
    %41 = vector.load %arg3[%c7, %c0_48, %c0_49] : memref<9x64x28xf32, #tpu.memory_space<vmem>>, vector<1x64x28xf32>
    %42 = vector.shape_cast %41 : vector<1x64x28xf32> to vector<64x28xf32>
    %c7_50 = arith.constant 7 : index
    %c0_51 = arith.constant 0 : index
    %c0_52 = arith.constant 0 : index
    %c0_53 = arith.constant 0 : index
    %43 = vector.load %arg2[%c7_50, %c0_51, %c0_52, %c0_53] : memref<9x1x28x64xf32, #tpu.memory_space<vmem>>, vector<1x1x28x64xf32>
    %44 = vector.shape_cast %43 : vector<1x1x28x64xf32> to vector<28x64xf32>
    %cst_54 = arith.constant dense<0.000000e+00> : vector<64x64xf32>
    %45 = tpu.matmul %42, %44, %cst_54 {dimension_numbers = #tpu.dot_dimension_numbers<[1], [0], [0], [1], [0, 0, 1, 1], [], []>} : vector<64x28xf32>, vector<28x64xf32>, vector<64x64xf32> -> vector<64x64xf32>
    %46 = arith.addf %40, %45 : vector<64x64xf32>
    %c8 = arith.constant 8 : index
    %c0_55 = arith.constant 0 : index
    %c0_56 = arith.constant 0 : index
    %47 = vector.load %arg3[%c8, %c0_55, %c0_56] : memref<9x64x28xf32, #tpu.memory_space<vmem>>, vector<1x64x28xf32>
    %48 = vector.shape_cast %47 : vector<1x64x28xf32> to vector<64x28xf32>
    %c8_57 = arith.constant 8 : index
    %c0_58 = arith.constant 0 : index
    %c0_59 = arith.constant 0 : index
    %c0_60 = arith.constant 0 : index
    %49 = vector.load %arg2[%c8_57, %c0_58, %c0_59, %c0_60] : memref<9x1x28x64xf32, #tpu.memory_space<vmem>>, vector<1x1x28x64xf32>
    %50 = vector.shape_cast %49 : vector<1x1x28x64xf32> to vector<28x64xf32>
    %cst_61 = arith.constant dense<0.000000e+00> : vector<64x64xf32>
    %51 = tpu.matmul %48, %50, %cst_61 {dimension_numbers = #tpu.dot_dimension_numbers<[1], [0], [0], [1], [0, 0, 1, 1], [], []>} : vector<64x28xf32>, vector<28x64xf32>, vector<64x64xf32> -> vector<64x64xf32>
    %52 = arith.addf %46, %51 : vector<64x64xf32>
    %c0_62 = arith.constant 0 : index
    %c0_63 = arith.constant 0 : index
    %53 = vector.load %arg4[%c0_62, %c0_63] : memref<64x1xf32, #tpu.memory_space<vmem>>, vector<64x1xf32>
    %54 = vector.broadcast %53 : vector<64x1xf32> to vector<64x64xf32>
    %55 = arith.mulf %52, %54 : vector<64x64xf32>
    %c0_64 = arith.constant 0 : index
    %c0_65 = arith.constant 0 : index
    %56 = vector.load %arg5[%c0_64, %c0_65] : memref<64x1xf32, #tpu.memory_space<vmem>>, vector<64x1xf32>
    %57 = vector.broadcast %56 : vector<64x1xf32> to vector<64x64xf32>
    %58 = arith.addf %55, %57 : vector<64x64xf32>
    %cst_66 = arith.constant 0.000000e+00 : f32
    %59 = vector.broadcast %cst_66 : f32 to vector<64x64xf32>
    %60 = arith.maximumf %58, %59 : vector<64x64xf32>
    %c0_67 = arith.constant 0 : index
    %c0_68 = arith.constant 0 : index
    %c0_69 = arith.constant 0 : index
    %61 = vector.load %arg6[%c0_67, %c0_68, %c0_69] : memref<1x64x64xf32, #tpu.memory_space<vmem>>, vector<1x64x64xf32>
    %62 = vector.shape_cast %61 : vector<1x64x64xf32> to vector<64x64xf32>
    %63 = vector.shape_cast %60 : vector<64x64xf32> to vector<1x64x64xf32>
    tpu.vector_store %arg6[%c0_67, %c0_68, %c0_69], %63 {strides = array<i32>} : memref<1x64x64xf32, #tpu.memory_space<vmem>>, vector<1x64x64xf32>,
    return
  }
  func.func @transform_0(%arg0: i32, %arg1: i32) -> (i32, i32, i32, i32) {
    %c0_i32 = arith.constant 0 : i32
    %c0_i32_0 = arith.constant 0 : i32
    %c0_i32_1 = arith.constant 0 : i32
    return %c0_i32, %arg0, %c0_i32_0, %arg1 : i32, i32, i32, i32
  }
  func.func @transform_1(%arg0: i32, %arg1: i32) -> (i32, i32, i32) {
    %c0_i32 = arith.constant 0 : i32
    %c0_i32_0 = arith.constant 0 : i32
    %c0_i32_1 = arith.constant 0 : i32
    %c0_i32_2 = arith.constant 0 : i32
    return %c0_i32, %c0_i32_0, %c0_i32_1 : i32, i32, i32
  }
  func.func @transform_2(%arg0: i32, %arg1: i32) -> (i32, i32) {
    %c0_i32 = arith.constant 0 : i32
    %c0_i32_0 = arith.constant 0 : i32
    %c0_i32_1 = arith.constant 0 : i32
    return %c0_i32, %c0_i32_0 : i32, i32
  }
  func.func @transform_3(%arg0: i32, %arg1: i32) -> (i32, i32) {
    %c0_i32 = arith.constant 0 : i32
    %c0_i32_0 = arith.constant 0 : i32
    %c0_i32_1 = arith.constant 0 : i32
    return %c0_i32, %c0_i32_0 : i32, i32
  }
  func.func @transform_4(%arg0: i32, %arg1: i32) -> (i32, i32, i32) {
    %c0_i32 = arith.constant 0 : i32
    %c0_i32_0 = arith.constant 0 : i32
    return %arg0, %c0_i32, %arg1 : i32, i32, i32
  }
}

</mosaic_0001>

<llo_original>
// kernel: tpu_custom_call.1
$region0: #{tpu_custom_call.1}
  #allocation0 [shape = 'u32[]', space=smem, size = 0x4, offset = 0x4, fixed_abs, tag = 'smem constant byte address 0x4 - core index']
  #allocation1 [shape = 'u32[144,128]{1,0:T(1,128)}', space=vmem, size = 0x12000, scoped, tag = 'internal scratch']
  %s0 = inlined_call_operand.vmem [shape: f32[9,2,28,64], index: 0, kind: input, shape index: {}]
  %s1 = inlined_call_operand.vmem [shape: f32[9,64,28], index: 1, kind: input, shape index: {}]
  %s2 = inlined_call_operand.vmem [shape: f32[64,1], index: 2, kind: input, shape index: {}]
  %s3 = inlined_call_operand.vmem [shape: f32[64,1], index: 3, kind: input, shape index: {}]
  %s4 = inlined_call_operand.hbm [shape: f32[2,64,64], index: 4, kind: output, shape index: {}]
  %s5 = sld [smem:[#allocation0]]
  $region87: #{tpu_custom_call.1} parent=0
    _
  %s7 = ssub.s32 1, %s5
  %s8 = scalar_select 0, %s7, %s5
  $region1: #{tpu_custom_call.1} parent=0
    #allocation2 [shape = 'u8[294912]{0}', space=vmem, size = 0x48000, scoped, tag = 'input window, operand 0']
    #allocation3 [shape = 'u8[65536]{0}', space=vmem, size = 0x10000, scoped, tag = 'output window, operand 0']
    #allocation4 [shape = 's32[2]{0}', space=sflag, size = 0x8, scoped, tag = 'scoped memory for tpu_custom_call.1']
    %9 = vsyncpa [#allocation4], 0
    %s10 = scalar_lea.sflag [#allocation4], 1
    %11 = vsyncpa %s10, 0
    loop: start=0, step=1, limit=4
    $region2: #{tpu_custom_call.1} parent=1 // loop_pre_header
      _
    $region3: #{tpu_custom_call.1} parent=1 // loop_header
      %s13 = sphi 0, %s17
      %p14 = scmp.ge.s32.totalorder %s13, 4
      %s20 = sphi 0, %s32
      %s21 = sphi 0, %s28
      %s22 = sphi 0, %s20
      %s23 = sphi 0, %s21
      %s24 = sphi 0, %s22
      %s25 = sphi 0, %s23
      %s37 = sphi 0, %s39
      %s40 = sphi 0, %s37
      %s41 = sphi 0, %s40
      %s57 = sphi 0, %s41
      %s61 = sphi 0, %s61
      %s63 = sphi 0, %s61
      %s64 = sphi 0, %s63
      %s78 = sphi 0, %s64
      %s82 = sphi 0, %s82
      %s84 = sphi 0, %s82
      %s85 = sphi 0, %s84
      %s99 = sphi 0, %s85
      %s103 = sphi 0, %s103
      %s105 = sphi 0, %s103
      %s106 = sphi 0, %s105
      %s120 = sphi 0, %s106
      %s128 = sphi 0, %s130
      %s131 = sphi 0, %s128
      %s132 = sphi 0, %s131
      %s148 = sphi 0, %s132
    $region4: #{tpu_custom_call.1} parent=1 // loop_header_branch
      %16 = sbr.rel (%p14) target = $region8
    $region5: #{tpu_custom_call.1} parent=1 // loop_body
      %s18 = ssub.s32 %s13, 1
      %s19 = ssub.s32 %s13, 2
      %s26 = sadd.s32 1, %s21
      %p27 = scmp.ge.s32.totalorder %s26, 1
      %s28 = scalar_select %p27, 0, %s26
      %s29 = sadd.s32 1, %s20
      %s30 = scalar_select %p27, %s29, %s20
      %p31 = scmp.ge.s32.totalorder %s30, 2
      %s32 = scalar_select %p31, 0, %s30
      %s33 = ssub.s32 %s20, %s32
      %s34 = ssub.s32 %s21, %s28
      %s35 = sor.u32 %s33, %s34
      %p36 = scmp.eq.s32.totalorder %s35, 0
      %s38 = sadd.s32 %s37, 1
      %s39 = scalar_select %p36, %s37, %s38
      %p42 = pneg %p36
      %p43 = scmp.eq.s32.totalorder %s13, 1
      %p44 = por %p42, %p43
      %p45 = scmp.ne.s32.totalorder %s37, %s40
      %p46 = scmp.eq.s32.totalorder %s13, 0
      %p47 = por %p45, %p46
      %p48 = scmp.ne.s32.totalorder %s37, %s40
      %p49 = scmp.eq.s32.totalorder %s18, 1
      %p50 = por %p48, %p49
      %p51 = scmp.ne.s32.totalorder %s40, %s41
      %p52 = scmp.eq.s32.totalorder %s18, 0
      %p53 = por %p51, %p52
      %p54 = scmp.ne.s32.totalorder %s40, %s41
      %p55 = scmp.eq.s32.totalorder %s19, 1
      %p56 = por %p54, %p55
      %p58 = scmp.ne.s32.totalorder %s41, %s57
      %p59 = scmp.eq.s32.totalorder %s19, 0
      %p60 = por %p58, %p59
      %s62 = sadd.s32 %s61, 1
      %p65 = scmp.eq.s32.totalorder %s13, 1
      %p66 = scmp.ne.s32.totalorder %s61, %s63
      %p67 = scmp.eq.s32.totalorder %s13, 0
      %p68 = por %p66, %p67
      %p69 = scmp.ne.s32.totalorder %s61, %s63
      %p70 = scmp.eq.s32.totalorder %s18, 1
      %p71 = por %p69, %p70
      %p72 = scmp.ne.s32.totalorder %s63, %s64
      %p73 = scmp.eq.s32.totalorder %s18, 0
      %p74 = por %p72, %p73
      %p75 = scmp.ne.s32.totalorder %s63, %s64
      %p76 = scmp.eq.s32.totalorder %s19, 1
      %p77 = por %p75, %p76
      %p79 = scmp.ne.s32.totalorder %s64, %s78
      %p80 = scmp.eq.s32.totalorder %s19, 0
      %p81 = por %p79, %p80
      %s83 = sadd.s32 %s82, 1
      %p86 = scmp.eq.s32.totalorder %s13, 1
      %p87 = scmp.ne.s32.totalorder %s82, %s84
      %p88 = scmp.eq.s32.totalorder %s13, 0
      %p89 = por %p87, %p88
      %p90 = scmp.ne.s32.totalorder %s82, %s84
      %p91 = scmp.eq.s32.totalorder %s18, 1
      %p92 = por %p90, %p91
      %p93 = scmp.ne.s32.totalorder %s84, %s85
      %p94 = scmp.eq.s32.totalorder %s18, 0
      %p95 = por %p93, %p94
      %p96 = scmp.ne.s32.totalorder %s84, %s85
      %p97 = scmp.eq.s32.totalorder %s19, 1
      %p98 = por %p96, %p97
      %p100 = scmp.ne.s32.totalorder %s85, %s99
      %p101 = scmp.eq.s32.totalorder %s19, 0
      %p102 = por %p100, %p101
      %s104 = sadd.s32 %s103, 1
      %p107 = scmp.eq.s32.totalorder %s13, 1
      %p108 = scmp.ne.s32.totalorder %s103, %s105
      %p109 = scmp.eq.s32.totalorder %s13, 0
      %p110 = por %p108, %p109
      %p111 = scmp.ne.s32.totalorder %s103, %s105
      %p112 = scmp.eq.s32.totalorder %s18, 1
      %p113 = por %p111, %p112
      %p114 = scmp.ne.s32.totalorder %s105, %s106
      %p115 = scmp.eq.s32.totalorder %s18, 0
      %p116 = por %p114, %p115
      %p117 = scmp.ne.s32.totalorder %s105, %s106
      %p118 = scmp.eq.s32.totalorder %s19, 1
      %p119 = por %p117, %p118
      %p121 = scmp.ne.s32.totalorder %s106, %s120
      %p122 = scmp.eq.s32.totalorder %s19, 0
      %p123 = por %p121, %p122
      %s124 = ssub.s32 %s20, %s32
      %s125 = ssub.s32 %s21, %s28
      %s126 = sor.u32 %s124, %s125
      %p127 = scmp.eq.s32.totalorder %s126, 0
      %s129 = sadd.s32 %s128, 1
      %s130 = scalar_select %p127, %s128, %s129
      %p133 = pneg %p127
      %p134 = scmp.eq.s32.totalorder %s13, 1
      %p135 = por %p133, %p134
      %p136 = scmp.ne.s32.totalorder %s128, %s131
      %p137 = scmp.eq.s32.totalorder %s13, 0
      %p138 = por %p136, %p137
      %p139 = scmp.ne.s32.totalorder %s128, %s131
      %p140 = scmp.eq.s32.totalorder %s18, 1
      %p141 = por %p139, %p140
      %p142 = scmp.ne.s32.totalorder %s131, %s132
      %p143 = scmp.eq.s32.totalorder %s18, 0
      %p144 = por %p142, %p143
      %p145 = scmp.ne.s32.totalorder %s131, %s132
      %p146 = scmp.eq.s32.totalorder %s19, 1
      %p147 = por %p145, %p146
      %p149 = scmp.ne.s32.totalorder %s132, %s148
      %p150 = scmp.eq.s32.totalorder %s19, 0
      %p151 = por %p149, %p150
      %p152 = scmp.le.s32.totalorder 1, %s13
      %p153 = scmp.lt.s32.totalorder %s13, 3
      %p154 = pnand %p152, %p153
      %p155 = pneg %p154
      // Predicated region
      $region9: #{tpu_custom_call.1} parent=5 // pred_check
        _
      $region10: #{tpu_custom_call.1} parent=5 // pred_check_branch
        %157 = sbr.rel (%p154) target = $region12
      $region11: #{tpu_custom_call.1} parent=5 // pred_region
        %s158 = ssub.s32 %s13, 1
        // Predicated region
        $region13: #{tpu_custom_call.1} parent=11 // pred_check
          %p159 = pneg %p74
        $region14: #{tpu_custom_call.1} parent=11 // pred_check_branch
          %161 = sbr.rel (%p159) target = $region16
        $region15: #{tpu_custom_call.1} parent=11 // pred_region
          _
        $region16: #{tpu_custom_call.1} parent=11 // pred_fallthru
          _
        // Predicated region
        $region17: #{tpu_custom_call.1} parent=11 // pred_check
          %p162 = pneg %p95
        $region18: #{tpu_custom_call.1} parent=11 // pred_check_branch
          %164 = sbr.rel (%p162) target = $region20
        $region19: #{tpu_custom_call.1} parent=11 // pred_region
          _
        $region20: #{tpu_custom_call.1} parent=11 // pred_fallthru
          _
        // Predicated region
        $region21: #{tpu_custom_call.1} parent=11 // pred_check
          %p165 = pneg %p116
        $region22: #{tpu_custom_call.1} parent=11 // pred_check_branch
          %167 = sbr.rel (%p165) target = $region24
        $region23: #{tpu_custom_call.1} parent=11 // pred_region
          _
        $region24: #{tpu_custom_call.1} parent=11 // pred_fallthru
          _
      $region12: #{tpu_custom_call.1} parent=5 // pred_fallthru
        _
      %p168 = scmp.lt.s32.totalorder %s13, 2
      // Predicated region
      $region25: #{tpu_custom_call.1} parent=5 // pred_check
        %p169 = pneg %p168
      $region26: #{tpu_custom_call.1} parent=5 // pred_check_branch
        %171 = sbr.rel (%p169) target = $region28
      $region27: #{tpu_custom_call.1} parent=5 // pred_region
        // Predicated region
        $region29: #{tpu_custom_call.1} parent=27 // pred_check
          %p172 = pneg %p47
        $region30: #{tpu_custom_call.1} parent=27 // pred_check_branch
          %174 = sbr.rel (%p172) target = $region32
        $region31: #{tpu_custom_call.1} parent=27 // pred_region
          %s175 = sand.u32 %s37, 1
          %s176 = sand.u32 %s37, 1
          %s177 = smul.addr %s176, 288
          %s178 = scalar_lea.vmem [#allocation2], %s177
          %s179 = smul.addr %s20, 4
          %s180 = sadd.s32 %s21, %s179
          %s181 = smul.addr %s180, 8
          %s182 = scalar_lea.vmem %s0, %s181
          // Predicated region
          $region33: #{tpu_custom_call.1} parent=31 // pred_check
            _
          $region34: #{tpu_custom_call.1} parent=31 // pred_check_branch
            %184 = sbr.rel (0) target = $region36
          $region35: #{tpu_custom_call.1} parent=31 // pred_region
            // Predicated region
            $region37: #{tpu_custom_call.1} parent=35 // pred_check
              _
            $region38: #{tpu_custom_call.1} parent=35 // pred_check_branch
              %186 = sbr.rel (0) target = $region40
            $region39: #{tpu_custom_call.1} parent=35 // pred_region
              // Predicated region
              $region52: #{tpu_custom_call.1} parent=39 // pred_check
                _
              $region53: #{tpu_custom_call.1} parent=39 // pred_check_branch
                %272 = sbr.rel (0) target = $region55
              $region54: #{tpu_custom_call.1} parent=39 // pred_region
                loop: start=0, step=1, limit=1
                $region56: #{tpu_custom_call.1} parent=54 // loop_pre_header
                  _
                $region57: #{tpu_custom_call.1} parent=54 // loop_header
                  %s274 = sphi 0, %s278
                  %p275 = scmp.ge.s32.totalorder %s274, 1
                  %s279 = sphi %s182, %s182
                  %s280 = sphi %s178, %s178
                $region58: #{tpu_custom_call.1} parent=54 // loop_header_branch
                  %277 = sbr.rel (%p275) target = $region62
                $region59: #{tpu_custom_call.1} parent=54 // loop_body
                  %v281 = vld [vmem:[%s279] sm:$0xff]
                  %282 = vst [vmem:[%s280] sm:$0xff] %v281
                  %v283 = vld [vmem:[%s279 + $0x8] sm:$0xff]
                  %284 = vst [vmem:[%s280 + $0x8] sm:$0xff] %v283
                  %v285 = vld [vmem:[%s279 + $0x10] sm:$0xff]
                  %286 = vst [vmem:[%s280 + $0x10] sm:$0xff] %v285
                  %v287 = vld [vmem:[%s279 + $0x18] sm:$0xff]
                  %288 = vst [vmem:[%s280 + $0x18] sm:$0xff] %v287
                  %v289 = vld [vmem:[%s279 + $0x40] sm:$0xff]
                  %290 = vst [vmem:[%s280 + $0x20] sm:$0xff] %v289
                  %v291 = vld [vmem:[%s279 + $0x48] sm:$0xff]
                  %292 = vst [vmem:[%s280 + $0x28] sm:$0xff] %v291
                  %v293 = vld [vmem:[%s279 + $0x50] sm:$0xff]
                  %294 = vst [vmem:[%s280 + $0x30] sm:$0xff] %v293
                  %v295 = vld [vmem:[%s279 + $0x58] sm:$0xff]
                  %296 = vst [vmem:[%s280 + $0x38] sm:$0xff] %v295
                  %v297 = vld [vmem:[%s279 + $0x80] sm:$0xff]
                  %298 = vst [vmem:[%s280 + $0x40] sm:$0xff] %v297
                  %v299 = vld [vmem:[%s279 + $0x88] sm:$0xff]
                  %300 = vst [vmem:[%s280 + $0x48] sm:$0xff] %v299
                  %v301 = vld [vmem:[%s279 + $0x90] sm:$0xff]
                  %302 = vst [vmem:[%s280 + $0x50] sm:$0xff] %v301
                  %v303 = vld [vmem:[%s279 + $0x98] sm:$0xff]
                  %304 = vst [vmem:[%s280 + $0x58] sm:$0xff] %v303
                  %v305 = vld [vmem:[%s279 + $0xc0] sm:$0xff]
                  %306 = vst [vmem:[%s280 + $0x60] sm:$0xff] %v305
                  %v307 = vld [vmem:[%s279 + $0xc8] sm:$0xff]
                  %308 = vst [vmem:[%s280 + $0x68] sm:$0xff] %v307
                  %v309 = vld [vmem:[%s279 + $0xd0] sm:$0xff]
                  %310 = vst [vmem:[%s280 + $0x70] sm:$0xff] %v309
                  %v311 = vld [vmem:[%s279 + $0xd8] sm:$0xff]
                  %312 = vst [vmem:[%s280 + $0x78] sm:$0xff] %v311
                  %v313 = vld [vmem:[%s279 + $0x100] sm:$0xff]
                  %314 = vst [vmem:[%s280 + $0x80] sm:$0xff] %v313
                  %v315 = vld [vmem:[%s279 + $0x108] sm:$0xff]
                  %316 = vst [vmem:[%s280 + $0x88] sm:$0xff] %v315
                  %v317 = vld [vmem:[%s279 + $0x110] sm:$0xff]
                  %318 = vst [vmem:[%s280 + $0x90] sm:$0xff] %v317
                  %v319 = vld [vmem:[%s279 + $0x118] sm:$0xff]
                  %320 = vst [vmem:[%s280 + $0x98] sm:$0xff] %v319
                  %v321 = vld [vmem:[%s279 + $0x140] sm:$0xff]
                  %322 = vst [vmem:[%s280 + $0xa0] sm:$0xff] %v321
                  %v323 = vld [vmem:[%s279 + $0x148] sm:$0xff]
                  %324 = vst [vmem:[%s280 + $0xa8] sm:$0xff] %v323
                  %v325 = vld [vmem:[%s279 + $0x150] sm:$0xff]
                  %326 = vst [vmem:[%s280 + $0xb0] sm:$0xff] %v325
                  %v327 = vld [vmem:[%s279 + $0x158] sm:$0xff]
                  %328 = vst [vmem:[%s280 + $0xb8] sm:$0xff] %v327
                  %v329 = vld [vmem:[%s279 + $0x180] sm:$0xff]
                  %330 = vst [vmem:[%s280 + $0xc0] sm:$0xff] %v329
                  %v331 = vld [vmem:[%s279 + $0x188] sm:$0xff]
                  %332 = vst [vmem:[%s280 + $0xc8] sm:$0xff] %v331
                  %v333 = vld [vmem:[%s279 + $0x190] sm:$0xff]
                  %334 = vst [vmem:[%s280 + $0xd0] sm:$0xff] %v333
                  %v335 = vld [vmem:[%s279 + $0x198] sm:$0xff]
                  %336 = vst [vmem:[%s280 + $0xd8] sm:$0xff] %v335
                  %v337 = vld [vmem:[%s279 + $0x1c0] sm:$0xff]
                  %338 = vst [vmem:[%s280 + $0xe0] sm:$0xff] %v337
                  %v339 = vld [vmem:[%s279 + $0x1c8] sm:$0xff]
                  %340 = vst [vmem:[%s280 + $0xe8] sm:$0xff] %v339
                  %v341 = vld [vmem:[%s279 + $0x1d0] sm:$0xff]
                  %342 = vst [vmem:[%s280 + $0xf0] sm:$0xff] %v341
                  %v343 = vld [vmem:[%s279 + $0x1d8] sm:$0xff]
                  %344 = vst [vmem:[%s280 + $0xf8] sm:$0xff] %v343
                  %v345 = vld [vmem:[%s279 + $0x200] sm:$0xff]
                  %346 = vst [vmem:[%s280 + $0x100] sm:$0xff] %v345
                  %v347 = vld [vmem:[%s279 + $0x208] sm:$0xff]
                  %348 = vst [vmem:[%s280 + $0x108] sm:$0xff] %v347
                  %v349 = vld [vmem:[%s279 + $0x210] sm:$0xff]
                  %350 = vst [vmem:[%s280 + $0x110] sm:$0xff] %v349
                  %v351 = vld [vmem:[%s279 + $0x218] sm:$0xff]
                  %352 = vst [vmem:[%s280 + $0x118] sm:$0xff] %v351
                $region60: #{tpu_custom_call.1} parent=54 // loop_footer
                  %s278 = sadd.s32 1, %s274
                $region61: #{tpu_custom_call.1} parent=54 // loop_footer_branch
                  %273 = sbr.rel target = $region57
                $region62: #{tpu_custom_call.1} parent=54 // loop_exit
                  _
              $region55: #{tpu_custom_call.1} parent=39 // pred_fallthru
                _
              // Predicated region
              $region63: #{tpu_custom_call.1} parent=39 // pred_check
                _
              $region64: #{tpu_custom_call.1} parent=39 // pred_check_branch
                %354 = sbr.rel target = $region66
              $region65: #{tpu_custom_call.1} parent=39 // pred_region
                _
              $region66: #{tpu_custom_call.1} parent=39 // pred_fallthru
                _
            $region40: #{tpu_custom_call.1} parent=35 // pred_fallthru
              _
            // Predicated region
            $region41: #{tpu_custom_call.1} parent=35 // pred_check
              _
            $region42: #{tpu_custom_call.1} parent=35 // pred_check_branch
              %188 = sbr.rel target = $region44
            $region43: #{tpu_custom_call.1} parent=35 // pred_region
              %s190 = ssub.s32 256, 1
              loop: start=0, step=1, limit=1
              $region45: #{tpu_custom_call.1} parent=43 // loop_pre_header
                _
              $region46: #{tpu_custom_call.1} parent=43 // loop_header
                %s192 = sphi 0, %s196
                %p193 = scmp.ge.s32.totalorder %s192, 1
                %s197 = sphi %s182, %s182
                %s198 = sphi %s178, %s178
              $region47: #{tpu_custom_call.1} parent=43 // loop_header_branch
                %195 = sbr.rel (%p193) target = $region51
              $region48: #{tpu_custom_call.1} parent=43 // loop_body
                %v199 = vld [vmem:[%s197] sm:%s190]
                %200 = vst [vmem:[%s198] sm:%s190] %v199
                %v201 = vld [vmem:[%s197 + $0x8] sm:%s190]
                %202 = vst [vmem:[%s198 + $0x8] sm:%s190] %v201
                %v203 = vld [vmem:[%s197 + $0x10] sm:%s190]
                %204 = vst [vmem:[%s198 + $0x10] sm:%s190] %v203
                %v205 = vld [vmem:[%s197 + $0x18] sm:%s190]
                %206 = vst [vmem:[%s198 + $0x18] sm:%s190] %v205
                %v207 = vld [vmem:[%s197 + $0x40] sm:%s190]
                %208 = vst [vmem:[%s198 + $0x20] sm:%s190] %v207
                %v209 = vld [vmem:[%s197 + $0x48] sm:%s190]
                %210 = vst [vmem:[%s198 + $0x28] sm:%s190] %v209
                %v211 = vld [vmem:[%s197 + $0x50] sm:%s190]
                %212 = vst [vmem:[%s198 + $0x30] sm:%s190] %v211
                %v213 = vld [vmem:[%s197 + $0x58] sm:%s190]
                %214 = vst [vmem:[%s198 + $0x38] sm:%s190] %v213
                %v215 = vld [vmem:[%s197 + $0x80] sm:%s190]
                %216 = vst [vmem:[%s198 + $0x40] sm:%s190] %v215
                %v217 = vld [vmem:[%s197 + $0x88] sm:%s190]
                %218 = vst [vmem:[%s198 + $0x48] sm:%s190] %v217
                %v219 = vld [vmem:[%s197 + $0x90] sm:%s190]
                %220 = vst [vmem:[%s198 + $0x50] sm:%s190] %v219
                %v221 = vld [vmem:[%s197 + $0x98] sm:%s190]
                %222 = vst [vmem:[%s198 + $0x58] sm:%s190] %v221
                %v223 = vld [vmem:[%s197 + $0xc0] sm:%s190]
                %224 = vst [vmem:[%s198 + $0x60] sm:%s190] %v223
                %v225 = vld [vmem:[%s197 + $0xc8] sm:%s190]
                %226 = vst [vmem:[%s198 + $0x68] sm:%s190] %v225
                %v227 = vld [vmem:[%s197 + $0xd0] sm:%s190]
                %228 = vst [vmem:[%s198 + $0x70] sm:%s190] %v227
                %v229 = vld [vmem:[%s197 + $0xd8] sm:%s190]
                %230 = vst [vmem:[%s198 + $0x78] sm:%s190] %v229
                %v231 = vld [vmem:[%s197 + $0x100] sm:%s190]
                %232 = vst [vmem:[%s198 + $0x80] sm:%s190] %v231
                %v233 = vld [vmem:[%s197 + $0x108] sm:%s190]
                %234 = vst [vmem:[%s198 + $0x88] sm:%s190] %v233
                %v235 = vld [vmem:[%s197 + $0x110] sm:%s190]
                %236 = vst [vmem:[%s198 + $0x90] sm:%s190] %v235
                %v237 = vld [vmem:[%s197 + $0x118] sm:%s190]
                %238 = vst [vmem:[%s198 + $0x98] sm:%s190] %v237
                %v239 = vld [vmem:[%s197 + $0x140] sm:%s190]
                %240 = vst [vmem:[%s198 + $0xa0] sm:%s190] %v239
                %v241 = vld [vmem:[%s197 + $0x148] sm:%s190]
                %242 = vst [vmem:[%s198 + $0xa8] sm:%s190] %v241
                %v243 = vld [vmem:[%s197 + $0x150] sm:%s190]
                %244 = vst [vmem:[%s198 + $0xb0] sm:%s190] %v243
                %v245 = vld [vmem:[%s197 + $0x158] sm:%s190]
                %246 = vst [vmem:[%s198 + $0xb8] sm:%s190] %v245
                %v247 = vld [vmem:[%s197 + $0x180] sm:%s190]
                %248 = vst [vmem:[%s198 + $0xc0] sm:%s190] %v247
                %v249 = vld [vmem:[%s197 + $0x188] sm:%s190]
                %250 = vst [vmem:[%s198 + $0xc8] sm:%s190] %v249
                %v251 = vld [vmem:[%s197 + $0x190] sm:%s190]
                %252 = vst [vmem:[%s198 + $0xd0] sm:%s190] %v251
                %v253 = vld [vmem:[%s197 + $0x198] sm:%s190]
                %254 = vst [vmem:[%s198 + $0xd8] sm:%s190] %v253
                %v255 = vld [vmem:[%s197 + $0x1c0] sm:%s190]
                %256 = vst [vmem:[%s198 + $0xe0] sm:%s190] %v255
                %v257 = vld [vmem:[%s197 + $0x1c8] sm:%s190]
                %258 = vst [vmem:[%s198 + $0xe8] sm:%s190] %v257
                %v259 = vld [vmem:[%s197 + $0x1d0] sm:%s190]
                %260 = vst [vmem:[%s198 + $0xf0] sm:%s190] %v259
                %v261 = vld [vmem:[%s197 + $0x1d8] sm:%s190]
                %262 = vst [vmem:[%s198 + $0xf8] sm:%s190] %v261
                %v263 = vld [vmem:[%s197 + $0x200] sm:%s190]
                %264 = vst [vmem:[%s198 + $0x100] sm:%s190] %v263
                %v265 = vld [vmem:[%s197 + $0x208] sm:%s190]
                %266 = vst [vmem:[%s198 + $0x108] sm:%s190] %v265
                %v267 = vld [vmem:[%s197 + $0x210] sm:%s190]
                %268 = vst [vmem:[%s198 + $0x110] sm:%s190] %v267
                %v269 = vld [vmem:[%s197 + $0x218] sm:%s190]
                %270 = vst [vmem:[%s198 + $0x118] sm:%s190] %v269
              $region49: #{tpu_custom_call.1} parent=43 // loop_footer
                %s196 = sadd.s32 1, %s192
              $region50: #{tpu_custom_call.1} parent=43 // loop_footer_branch
                %191 = sbr.rel target = $region46
              $region51: #{tpu_custom_call.1} parent=43 // loop_exit
                _
            $region44: #{tpu_custom_call.1} parent=35 // pred_fallthru
              _
          $region36: #{tpu_custom_call.1} parent=31 // pred_fallthru
            _
          %355 = vnop
        $region32: #{tpu_custom_call.1} parent=27 // pred_fallthru
          _
      $region28: #{tpu_custom_call.1} parent=5 // pred_fallthru
        _
      %p356 = scmp.le.s32.totalorder 1, %s13
      %p357 = scmp.lt.s32.totalorder %s13, 3
      %p358 = pnand %p356, %p357
      %p359 = pneg %p358
      // Predicated region
      $region67: #{tpu_custom_call.1} parent=5 // pred_check
        _
      $region68: #{tpu_custom_call.1} parent=5 // pred_check_branch
        %361 = sbr.rel (%p358) target = $region70
      $region69: #{tpu_custom_call.1} parent=5 // pred_region
        %s362 = ssub.s32 %s13, 1
        %s363 = sand.u32 %s40, 1
        %s364 = sand.u32 %s40, 1
        %s365 = smul.addr %s364, 288
        %s366 = scalar_lea.vmem [#allocation2], %s365
        // Predicated region
        $region71: #{tpu_custom_call.1} parent=69 // pred_check
          %p367 = pneg %p53
        $region72: #{tpu_custom_call.1} parent=69 // pred_check_branch
          %369 = sbr.rel (%p367) target = $region74
        $region73: #{tpu_custom_call.1} parent=69 // pred_region
          _
        $region74: #{tpu_custom_call.1} parent=69 // pred_fallthru
          _
        %s370 = sand.u32 %s40, 1
        %s371 = sand.u32 %s40, 1
        %s372 = smul.addr %s371, 288
        %s373 = scalar_lea.vmem [#allocation2], %s372
        %p374 = pneg %p53
        %p375 = pneg %p50
        %p376 = pneg %p74
        %p377 = pneg %p71
        %p378 = pneg %p95
        %p379 = pneg %p92
        %p380 = pneg %p116
        %p381 = pneg %p113
        %p382 = pneg %p144
        %p383 = pneg %p141
        %s384 = sand.u32 %s131, 1
        %s385 = scalar_lea.sflag [#allocation4], %s384
        %s386 = sand.u32 %s131, 1
        %s387 = smul.addr %s386, 64
        %s388 = scalar_lea.vmem [#allocation3], %s387
        %v389 = vld [vmem:[%s1] sm:$0xff]
        %v390 = vld [vmem:[%s1 + $0x8] sm:$0xff]
        %v391 = vld [vmem:[%s1 + $0x10] sm:$0xff]
        %v392 = vld [vmem:[%s1 + $0x18] sm:$0xff]
        %v393 = vld [vmem:[%s1 + $0x20] sm:$0xff]
        %v394 = vld [vmem:[%s1 + $0x28] sm:$0xff]
        %v395 = vld [vmem:[%s1 + $0x30] sm:$0xff]
        %v396 = vld [vmem:[%s1 + $0x38] sm:$0xff]
        %v397 = vld [vmem:[%s366] sm:$0xff]
        %v398 = vld [vmem:[%s366 + $0x8] sm:$0xff]
        %v399 = vld [vmem:[%s366 + $0x10] sm:$0xff]
        %v400 = vld [vmem:[%s366 + $0x18] sm:$0xf]
        %s401 = scalar_lea.vmem %s1, 64
        %v402 = vld [vmem:[%s401] sm:$0xff]
        %v403 = vld [vmem:[%s401 + $0x8] sm:$0xff]
        %v404 = vld [vmem:[%s401 + $0x10] sm:$0xff]
        %v405 = vld [vmem:[%s401 + $0x18] sm:$0xff]
        %v406 = vld [vmem:[%s401 + $0x20] sm:$0xff]
        %v407 = vld [vmem:[%s401 + $0x28] sm:$0xff]
        %v408 = vld [vmem:[%s401 + $0x30] sm:$0xff]
        %v409 = vld [vmem:[%s401 + $0x38] sm:$0xff]
        %s410 = scalar_lea.vmem %s366, 32 [#allocation2]
        %v411 = vld [vmem:[%s410] sm:$0xff]
        %v412 = vld [vmem:[%s410 + $0x8] sm:$0xff]
        %v413 = vld [vmem:[%s410 + $0x10] sm:$0xff]
        %v414 = vld [vmem:[%s410 + $0x18] sm:$0xf]
        %vm415 = vcmask 228352
        %v417 = vsel %vm415, %v402, 0
        %v420 = vsel %vm415, %v403, 0
        %v423 = vsel %vm415, %v404, 0
        %v426 = vsel %vm415, %v405, 0
        %v429 = vsel %vm415, %v406, 0
        %v432 = vsel %vm415, %v407, 0
        %v435 = vsel %vm415, %v408, 0
        %v438 = vsel %vm415, %v409, 0
        %vm440 = vcmask 1043456
        %v442 = vsel %vm440, %v414, 0
        %444 = vmatprep.subr.mxu0 0.0
        %445 = vmatpush1.msra.mxu0 0.0
        %446 = vmatprep.subr.mxu0 0.0
        %447 = vmatpush1.msra.mxu0 0.0
        %448 = vmatprep.subr.mxu0 0.0
        %449 = vmatpush1.msra.mxu0 0.0
        %450 = vmatprep.subr.mxu0 0.0
        %451 = vmatpush1.msra.mxu0 0.0
        %452 = vmatprep.subr.mxu0 0.0
        %453 = vmatpush1.msra.mxu0 0.0
        %454 = vmatprep.subr.mxu0 0.0
        %455 = vmatpush1.msra.mxu0 0.0
        %456 = vmatprep.subr.mxu0 0.0
        %457 = vmatpush1.msra.mxu0 0.0
        %458 = vmatprep.subr.mxu0 0.0
        %459 = vmatpush1.msra.mxu0 0.0
        %460 = vmatprep.subr.mxu0 0.0
        %461 = vmatpush1.msra.mxu0 0.0
        %462 = vmatprep.subr.mxu0 0.0
        %463 = vmatpush1.msra.mxu0 0.0
        %464 = vmatprep.subr.mxu0 0.0
        %465 = vmatpush1.msra.mxu0 0.0
        %466 = vmatprep.subr.mxu0 0.0
        %467 = vmatpush1.msra.mxu0 0.0
        %468 = vmatprep.subr.mxu0 0.0
        %469 = vmatpush1.msra.mxu0 %v442
        %470 = vmatprep.subr.mxu0 0.0
        %471 = vmatpush1.msra.mxu0 %v413
        %472 = vmatprep.subr.mxu0 0.0
        %473 = vmatpush1.msra.mxu0 %v412
        %474 = vmatprep.subr.mxu0 0.0
        %475 = vmatpush1.msra.mxu0 %v411
        %476 = vmatprep.subr.mxu0 0.0
        %477 = vmatpush2.msra.mxu0 0.0
        %478 = vmatprep.subr.mxu0 0.0
        %479 = vmatpush2.msra.mxu0 0.0
        %480 = vmatprep.subr.mxu0 0.0
        %481 = vmatpush2.msra.mxu0 0.0
        %482 = vmatprep.subr.mxu0 0.0
        %483 = vmatpush2.msra.mxu0 0.0
        %484 = vmatprep.subr.mxu0 0.0
        %485 = vmatpush2.msra.mxu0 0.0
        %486 = vmatprep.subr.mxu0 0.0
        %487 = vmatpush2.msra.mxu0 0.0
        %488 = vmatprep.subr.mxu0 0.0
        %489 = vmatpush2.msra.mxu0 0.0
        %490 = vmatprep.subr.mxu0 0.0
        %491 = vmatpush2.msra.mxu0 0.0
        %492 = vmatprep.subr.mxu0 0.0
        %493 = vmatpush2.msra.mxu0 0.0
        %494 = vmatprep.subr.mxu0 0.0
        %495 = vmatpush2.msra.mxu0 0.0
        %496 = vmatprep.subr.mxu0 0.0
        %497 = vmatpush2.msra.mxu0 0.0
        %498 = vmatprep.subr.mxu0 0.0
        %499 = vmatpush2.msra.mxu0 0.0
        %500 = vmatprep.subr.mxu0 0.0
        %501 = vmatpush2.msra.mxu0 0.0
        %502 = vmatprep.subr.mxu0 0.0
        %503 = vmatpush2.msra.mxu0 0.0
        %504 = vmatprep.subr.mxu0 0.0
        %505 = vmatpush2.msra.mxu0 0.0
        %506 = vmatprep.subr.mxu0 0.0
        %507 = vmatpush2.msra.mxu0 0.0
        %508 = vmatprep.mubr.f32.mxu0 0.0
        %509 = vmatmul.mubr.f32.gmra.mxu0 %v417
        %v510 = vpop.f32.mrf.mxu0
        %v511 = vadd.f32 0.0, %v510
        %v512 = vpop.f32.mrf.mxu0
        %513 = vmatprep.mubr.f32.mxu0 0.0
        %514 = vmatmul.mubr.f32.gmra.mxu0 %v420
        %v515 = vpop.f32.mrf.mxu0
        %v516 = vadd.f32 0.0, %v515
        %v517 = vpop.f32.mrf.mxu0
        %518 = vmatprep.mubr.f32.mxu0 0.0
        %519 = vmatmul.mubr.f32.gmra.mxu0 %v423
        %v520 = vpop.f32.mrf.mxu0
        %v521 = vadd.f32 0.0, %v520
        %v522 = vpop.f32.mrf.mxu0
        %523 = vmatprep.mubr.f32.mxu0 0.0
        %524 = vmatmul.mubr.f32.gmra.mxu0 %v426
        %v525 = vpop.f32.mrf.mxu0
        %v526 = vadd.f32 0.0, %v525
        %v527 = vpop.f32.mrf.mxu0
        %528 = vmatprep.mubr.f32.mxu0 0.0
        %529 = vmatmul.mubr.f32.gmra.mxu0 %v429
        %v530 = vpop.f32.mrf.mxu0
        %v531 = vadd.f32 0.0, %v530
        %v532 = vpop.f32.mrf.mxu0
        %533 = vmatprep.mubr.f32.mxu0 0.0
        %534 = vmatmul.mubr.f32.gmra.mxu0 %v432
        %v535 = vpop.f32.mrf.mxu0
        %v536 = vadd.f32 0.0, %v535
        %v537 = vpop.f32.mrf.mxu0
        %538 = vmatprep.mubr.f32.mxu0 0.0
        %539 = vmatmul.mubr.f32.gmra.mxu0 %v435
        %v540 = vpop.f32.mrf.mxu0
        %v541 = vadd.f32 0.0, %v540
        %v542 = vpop.f32.mrf.mxu0
        %543 = vmatprep.mubr.f32.mxu0 0.0
        %544 = vmatmul.mubr.f32.gmra.mxu0 %v438
        %v545 = vpop.f32.mrf.mxu0
        %v546 = vadd.f32 0.0, %v545
        %v547 = vpop.f32.mrf.mxu0
        %548 = vdwg.mxu0
        %v550 = vsel %vm415, %v389, 0
        %v553 = vsel %vm415, %v390, 0
        %v556 = vsel %vm415, %v391, 0
        %v559 = vsel %vm415, %v392, 0
        %v562 = vsel %vm415, %v393, 0
        %v565 = vsel %vm415, %v394, 0
        %v568 = vsel %vm415, %v395, 0
        %v571 = vsel %vm415, %v396, 0
        %v574 = vsel %vm440, %v400, 0
        %576 = vmatprep.subr.mxu0 0.0
        %577 = vmatpush1.msra.mxu0 0.0
        %578 = vmatprep.subr.mxu0 0.0
        %579 = vmatpush1.msra.mxu0 0.0
        %580 = vmatprep.subr.mxu0 0.0
        %581 = vmatpush1.msra.mxu0 0.0
        %582 = vmatprep.subr.mxu0 0.0
        %583 = vmatpush1.msra.mxu0 0.0
        %584 = vmatprep.subr.mxu0 0.0
        %585 = vmatpush1.msra.mxu0 0.0
        %586 = vmatprep.subr.mxu0 0.0
        %587 = vmatpush1.msra.mxu0 0.0
        %588 = vmatprep.subr.mxu0 0.0
        %589 = vmatpush1.msra.mxu0 0.0
        %590 = vmatprep.subr.mxu0 0.0
        %591 = vmatpush1.msra.mxu0 0.0
        %592 = vmatprep.subr.mxu0 0.0
        %593 = vmatpush1.msra.mxu0 0.0
        %594 = vmatprep.subr.mxu0 0.0
        %595 = vmatpush1.msra.mxu0 0.0
        %596 = vmatprep.subr.mxu0 0.0
        %597 = vmatpush1.msra.mxu0 0.0
        %598 = vmatprep.subr.mxu0 0.0
        %599 = vmatpush1.msra.mxu0 0.0
        %600 = vmatprep.subr.mxu0 0.0
        %601 = vmatpush1.msra.mxu0 %v574
        %602 = vmatprep.subr.mxu0 0.0
        %603 = vmatpush1.msra.mxu0 %v399
        %604 = vmatprep.subr.mxu0 0.0
        %605 = vmatpush1.msra.mxu0 %v398
        %606 = vmatprep.subr.mxu0 0.0
        %607 = vmatpush1.msra.mxu0 %v397
        %608 = vmatprep.subr.mxu0 0.0
        %609 = vmatpush2.msra.mxu0 0.0
        %610 = vmatprep.subr.mxu0 0.0
        %611 = vmatpush2.msra.mxu0 0.0
        %612 = vmatprep.subr.mxu0 0.0
        %613 = vmatpush2.msra.mxu0 0.0
        %614 = vmatprep.subr.mxu0 0.0
        %615 = vmatpush2.msra.mxu0 0.0
        %616 = vmatprep.subr.mxu0 0.0
        %617 = vmatpush2.msra.mxu0 0.0
        %618 = vmatprep.subr.mxu0 0.0
        %619 = vmatpush2.msra.mxu0 0.0
        %620 = vmatprep.subr.mxu0 0.0
        %621 = vmatpush2.msra.mxu0 0.0
        %622 = vmatprep.subr.mxu0 0.0
        %623 = vmatpush2.msra.mxu0 0.0
        %624 = vmatprep.subr.mxu0 0.0
        %625 = vmatpush2.msra.mxu0 0.0
        %626 = vmatprep.subr.mxu0 0.0
        %627 = vmatpush2.msra.mxu0 0.0
        %628 = vmatprep.subr.mxu0 0.0
        %629 = vmatpush2.msra.mxu0 0.0
        %630 = vmatprep.subr.mxu0 0.0
        %631 = vmatpush2.msra.mxu0 0.0
        %632 = vmatprep.subr.mxu0 0.0
        %633 = vmatpush2.msra.mxu0 0.0
        %634 = vmatprep.subr.mxu0 0.0
        %635 = vmatpush2.msra.mxu0 0.0
        %636 = vmatprep.subr.mxu0 0.0
        %637 = vmatpush2.msra.mxu0 0.0
        %638 = vmatprep.subr.mxu0 0.0
        %639 = vmatpush2.msra.mxu0 0.0
        %640 = vmatprep.mubr.f32.mxu0 0.0
        %641 = vmatmul.mubr.f32.gmra.mxu0 %v550
        %v642 = vpop.f32.mrf.mxu0
        %v643 = vadd.f32 %v511, %v642
        %v644 = vpop.f32.mrf.mxu0
        %645 = vmatprep.mubr.f32.mxu0 0.0
        %646 = vmatmul.mubr.f32.gmra.mxu0 %v553
        %v647 = vpop.f32.mrf.mxu0
        %v648 = vadd.f32 %v516, %v647
        %v649 = vpop.f32.mrf.mxu0
        %650 = vmatprep.mubr.f32.mxu0 0.0
        %651 = vmatmul.mubr.f32.gmra.mxu0 %v556
        %v652 = vpop.f32.mrf.mxu0
        %v653 = vadd.f32 %v521, %v652
        %v654 = vpop.f32.mrf.mxu0
        %655 = vmatprep.mubr.f32.mxu0 0.0
        %656 = vmatmul.mubr.f32.gmra.mxu0 %v559
        %v657 = vpop.f32.mrf.mxu0
        %v658 = vadd.f32 %v526, %v657
        %v659 = vpop.f32.mrf.mxu0
        %660 = vmatprep.mubr.f32.mxu0 0.0
        %661 = vmatmul.mubr.f32.gmra.mxu0 %v562
        %v662 = vpop.f32.mrf.mxu0
        %v663 = vadd.f32 %v531, %v662
        %v664 = vpop.f32.mrf.mxu0
        %665 = vmatprep.mubr.f32.mxu0 0.0
        %666 = vmatmul.mubr.f32.gmra.mxu0 %v565
        %v667 = vpop.f32.mrf.mxu0
        %v668 = vadd.f32 %v536, %v667
        %v669 = vpop.f32.mrf.mxu0
        %670 = vmatprep.mubr.f32.mxu0 0.0
        %671 = vmatmul.mubr.f32.gmra.mxu0 %v568
        %v672 = vpop.f32.mrf.mxu0
        %v673 = vadd.f32 %v541, %v672
        %v674 = vpop.f32.mrf.mxu0
        %675 = vmatprep.mubr.f32.mxu0 0.0
        %676 = vmatmul.mubr.f32.gmra.mxu0 %v571
        %v677 = vpop.f32.mrf.mxu0
        %v678 = vadd.f32 %v546, %v677
        %v679 = vpop.f32.mrf.mxu0
        %680 = vdwg.mxu0
        %s681 = scalar_lea.vmem %s1, 128
        %v682 = vld [vmem:[%s681] sm:$0xff]
        %v683 = vld [vmem:[%s681 + $0x8] sm:$0xff]
        %v684 = vld [vmem:[%s681 + $0x10] sm:$0xff]
        %v685 = vld [vmem:[%s681 + $0x18] sm:$0xff]
        %v686 = vld [vmem:[%s681 + $0x20] sm:$0xff]
        %v687 = vld [vmem:[%s681 + $0x28] sm:$0xff]
        %v688 = vld [vmem:[%s681 + $0x30] sm:$0xff]
        %v689 = vld [vmem:[%s681 + $0x38] sm:$0xff]
        %s690 = scalar_lea.vmem %s366, 64 [#allocation2]
        %v691 = vld [vmem:[%s690] sm:$0xff]
        %v692 = vld [vmem:[%s690 + $0x8] sm:$0xff]
        %v693 = vld [vmem:[%s690 + $0x10] sm:$0xff]
        %v694 = vld [vmem:[%s690 + $0x18] sm:$0xf]
        %v696 = vsel %vm415, %v682, 0
        %v699 = vsel %vm415, %v683, 0
        %v702 = vsel %vm415, %v684, 0
        %v705 = vsel %vm415, %v685, 0
        %v708 = vsel %vm415, %v686, 0
        %v711 = vsel %vm415, %v687, 0
        %v714 = vsel %vm415, %v688, 0
        %v717 = vsel %vm415, %v689, 0
        %v720 = vsel %vm440, %v694, 0
        %722 = vmatprep.subr.mxu0 0.0
        %723 = vmatpush1.msra.mxu0 0.0
        %724 = vmatprep.subr.mxu0 0.0
        %725 = vmatpush1.msra.mxu0 0.0
        %726 = vmatprep.subr.mxu0 0.0
        %727 = vmatpush1.msra.mxu0 0.0
        %728 = vmatprep.subr.mxu0 0.0
        %729 = vmatpush1.msra.mxu0 0.0
        %730 = vmatprep.subr.mxu0 0.0
        %731 = vmatpush1.msra.mxu0 0.0
        %732 = vmatprep.subr.mxu0 0.0
        %733 = vmatpush1.msra.mxu0 0.0
        %734 = vmatprep.subr.mxu0 0.0
        %735 = vmatpush1.msra.mxu0 0.0
        %736 = vmatprep.subr.mxu0 0.0
        %737 = vmatpush1.msra.mxu0 0.0
        %738 = vmatprep.subr.mxu0 0.0
        %739 = vmatpush1.msra.mxu0 0.0
        %740 = vmatprep.subr.mxu0 0.0
        %741 = vmatpush1.msra.mxu0 0.0
        %742 = vmatprep.subr.mxu0 0.0
        %743 = vmatpush1.msra.mxu0 0.0
        %744 = vmatprep.subr.mxu0 0.0
        %745 = vmatpush1.msra.mxu0 0.0
        %746 = vmatprep.subr.mxu0 0.0
        %747 = vmatpush1.msra.mxu0 %v720
        %748 = vmatprep.subr.mxu0 0.0
        %749 = vmatpush1.msra.mxu0 %v693
        %750 = vmatprep.subr.mxu0 0.0
        %751 = vmatpush1.msra.mxu0 %v692
        %752 = vmatprep.subr.mxu0 0.0
        %753 = vmatpush1.msra.mxu0 %v691
        %754 = vmatprep.subr.mxu0 0.0
        %755 = vmatpush2.msra.mxu0 0.0
        %756 = vmatprep.subr.mxu0 0.0
        %757 = vmatpush2.msra.mxu0 0.0
        %758 = vmatprep.subr.mxu0 0.0
        %759 = vmatpush2.msra.mxu0 0.0
        %760 = vmatprep.subr.mxu0 0.0
        %761 = vmatpush2.msra.mxu0 0.0
        %762 = vmatprep.subr.mxu0 0.0
        %763 = vmatpush2.msra.mxu0 0.0
        %764 = vmatprep.subr.mxu0 0.0
        %765 = vmatpush2.msra.mxu0 0.0
        %766 = vmatprep.subr.mxu0 0.0
        %767 = vmatpush2.msra.mxu0 0.0
        %768 = vmatprep.subr.mxu0 0.0
        %769 = vmatpush2.msra.mxu0 0.0
        %770 = vmatprep.subr.mxu0 0.0
        %771 = vmatpush2.msra.mxu0 0.0
        %772 = vmatprep.subr.mxu0 0.0
        %773 = vmatpush2.msra.mxu0 0.0
        %774 = vmatprep.subr.mxu0 0.0
        %775 = vmatpush2.msra.mxu0 0.0
        %776 = vmatprep.subr.mxu0 0.0
        %777 = vmatpush2.msra.mxu0 0.0
        %778 = vmatprep.subr.mxu0 0.0
        %779 = vmatpush2.msra.mxu0 0.0
        %780 = vmatprep.subr.mxu0 0.0
        %781 = vmatpush2.msra.mxu0 0.0
        %782 = vmatprep.subr.mxu0 0.0
        %783 = vmatpush2.msra.mxu0 0.0
        %784 = vmatprep.subr.mxu0 0.0
        %785 = vmatpush2.msra.mxu0 0.0
        %786 = vmatprep.mubr.f32.mxu0 0.0
        %787 = vmatmul.mubr.f32.gmra.mxu0 %v696
        %v788 = vpop.f32.mrf.mxu0
        %v789 = vadd.f32 0.0, %v788
        %v790 = vpop.f32.mrf.mxu0
        %791 = vmatprep.mubr.f32.mxu0 0.0
        %792 = vmatmul.mubr.f32.gmra.mxu0 %v699
        %v793 = vpop.f32.mrf.mxu0
        %v794 = vadd.f32 0.0, %v793
        %v795 = vpop.f32.mrf.mxu0
        %796 = vmatprep.mubr.f32.mxu0 0.0
        %797 = vmatmul.mubr.f32.gmra.mxu0 %v702
        %v798 = vpop.f32.mrf.mxu0
        %v799 = vadd.f32 0.0, %v798
        %v800 = vpop.f32.mrf.mxu0
        %801 = vmatprep.mubr.f32.mxu0 0.0
        %802 = vmatmul.mubr.f32.gmra.mxu0 %v705
        %v803 = vpop.f32.mrf.mxu0
        %v804 = vadd.f32 0.0, %v803
        %v805 = vpop.f32.mrf.mxu0
        %806 = vmatprep.mubr.f32.mxu0 0.0
        %807 = vmatmul.mubr.f32.gmra.mxu0 %v708
        %v808 = vpop.f32.mrf.mxu0
        %v809 = vadd.f32 0.0, %v808
        %v810 = vpop.f32.mrf.mxu0
        %811 = vmatprep.mubr.f32.mxu0 0.0
        %812 = vmatmul.mubr.f32.gmra.mxu0 %v711
        %v813 = vpop.f32.mrf.mxu0
        %v814 = vadd.f32 0.0, %v813
        %v815 = vpop.f32.mrf.mxu0
        %816 = vmatprep.mubr.f32.mxu0 0.0
        %817 = vmatmul.mubr.f32.gmra.mxu0 %v714
        %v818 = vpop.f32.mrf.mxu0
        %v819 = vadd.f32 0.0, %v818
        %v820 = vpop.f32.mrf.mxu0
        %821 = vmatprep.mubr.f32.mxu0 0.0
        %822 = vmatmul.mubr.f32.gmra.mxu0 %v717
        %v823 = vpop.f32.mrf.mxu0
        %v824 = vadd.f32 0.0, %v823
        %v825 = vpop.f32.mrf.mxu0
        %826 = vdwg.mxu0
        %v827 = vadd.f32 %v643, %v789
        %v828 = vadd.f32 %v648, %v794
        %v829 = vadd.f32 %v653, %v799
        %v830 = vadd.f32 %v658, %v804
        %v831 = vadd.f32 %v663, %v809
        %v832 = vadd.f32 %v668, %v814
        %v833 = vadd.f32 %v673, %v819
        %v834 = vadd.f32 %v678, %v824
        %s835 = scalar_lea.vmem %s1, 192
        %v836 = vld [vmem:[%s835] sm:$0xff]
        %v837 = vld [vmem:[%s835 + $0x8] sm:$0xff]
        %v838 = vld [vmem:[%s835 + $0x10] sm:$0xff]
        %v839 = vld [vmem:[%s835 + $0x18] sm:$0xff]
        %v840 = vld [vmem:[%s835 + $0x20] sm:$0xff]
        %v841 = vld [vmem:[%s835 + $0x28] sm:$0xff]
        %v842 = vld [vmem:[%s835 + $0x30] sm:$0xff]
        %v843 = vld [vmem:[%s835 + $0x38] sm:$0xff]
        %s844 = scalar_lea.vmem %s366, 96 [#allocation2]
        %v845 = vld [vmem:[%s844] sm:$0xff]
        %v846 = vld [vmem:[%s844 + $0x8] sm:$0xff]
        %v847 = vld [vmem:[%s844 + $0x10] sm:$0xff]
        %v848 = vld [vmem:[%s844 + $0x18] sm:$0xf]
        %v850 = vsel %vm415, %v836, 0
        %v853 = vsel %vm415, %v837, 0
        %v856 = vsel %vm415, %v838, 0
        %v859 = vsel %vm415, %v839, 0
        %v862 = vsel %vm415, %v840, 0
        %v865 = vsel %vm415, %v841, 0
        %v868 = vsel %vm415, %v842, 0
        %v871 = vsel %vm415, %v843, 0
        %v874 = vsel %vm440, %v848, 0
        %876 = vmatprep.subr.mxu0 0.0
        %877 = vmatpush1.msra.mxu0 0.0
        %878 = vmatprep.subr.mxu0 0.0
        %879 = vmatpush1.msra.mxu0 0.0
        %880 = vmatprep.subr.mxu0 0.0
        %881 = vmatpush1.msra.mxu0 0.0
        %882 = vmatprep.subr.mxu0 0.0
        %883 = vmatpush1.msra.mxu0 0.0
        %884 = vmatprep.subr.mxu0 0.0
        %885 = vmatpush1.msra.mxu0 0.0
        %886 = vmatprep.subr.mxu0 0.0
        %887 = vmatpush1.msra.mxu0 0.0
        %888 = vmatprep.subr.mxu0 0.0
        %889 = vmatpush1.msra.mxu0 0.0
        %890 = vmatprep.subr.mxu0 0.0
        %891 = vmatpush1.msra.mxu0 0.0
        %892 = vmatprep.subr.mxu0 0.0
        %893 = vmatpush1.msra.mxu0 0.0
        %894 = vmatprep.subr.mxu0 0.0
        %895 = vmatpush1.msra.mxu0 0.0
        %896 = vmatprep.subr.mxu0 0.0
        %897 = vmatpush1.msra.mxu0 0.0
        %898 = vmatprep.subr.mxu0 0.0
        %899 = vmatpush1.msra.mxu0 0.0
        %900 = vmatprep.subr.mxu0 0.0
        %901 = vmatpush1.msra.mxu0 %v874
        %902 = vmatprep.subr.mxu0 0.0
        %903 = vmatpush1.msra.mxu0 %v847
        %904 = vmatprep.subr.mxu0 0.0
        %905 = vmatpush1.msra.mxu0 %v846
        %906 = vmatprep.subr.mxu0 0.0
        %907 = vmatpush1.msra.mxu0 %v845
        %908 = vmatprep.subr.mxu0 0.0
        %909 = vmatpush2.msra.mxu0 0.0
        %910 = vmatprep.subr.mxu0 0.0
        %911 = vmatpush2.msra.mxu0 0.0
        %912 = vmatprep.subr.mxu0 0.0
        %913 = vmatpush2.msra.mxu0 0.0
        %914 = vmatprep.subr.mxu0 0.0
        %915 = vmatpush2.msra.mxu0 0.0
        %916 = vmatprep.subr.mxu0 0.0
        %917 = vmatpush2.msra.mxu0 0.0
        %918 = vmatprep.subr.mxu0 0.0
        %919 = vmatpush2.msra.mxu0 0.0
        %920 = vmatprep.subr.mxu0 0.0
        %921 = vmatpush2.msra.mxu0 0.0
        %922 = vmatprep.subr.mxu0 0.0
        %923 = vmatpush2.msra.mxu0 0.0
        %924 = vmatprep.subr.mxu0 0.0
        %925 = vmatpush2.msra.mxu0 0.0
        %926 = vmatprep.subr.mxu0 0.0
        %927 = vmatpush2.msra.mxu0 0.0
        %928 = vmatprep.subr.mxu0 0.0
        %929 = vmatpush2.msra.mxu0 0.0
        %930 = vmatprep.subr.mxu0 0.0
        %931 = vmatpush2.msra.mxu0 0.0
        %932 = vmatprep.subr.mxu0 0.0
        %933 = vmatpush2.msra.mxu0 0.0
        %934 = vmatprep.subr.mxu0 0.0
        %935 = vmatpush2.msra.mxu0 0.0
        %936 = vmatprep.subr.mxu0 0.0
        %937 = vmatpush2.msra.mxu0 0.0
        %938 = vmatprep.subr.mxu0 0.0
        %939 = vmatpush2.msra.mxu0 0.0
        %940 = vmatprep.mubr.f32.mxu0 0.0
        %941 = vmatmul.mubr.f32.gmra.mxu0 %v850
        %v942 = vpop.f32.mrf.mxu0
        %v943 = vadd.f32 0.0, %v942
        %v944 = vpop.f32.mrf.mxu0
        %945 = vmatprep.mubr.f32.mxu0 0.0
        %946 = vmatmul.mubr.f32.gmra.mxu0 %v853
        %v947 = vpop.f32.mrf.mxu0
        %v948 = vadd.f32 0.0, %v947
        %v949 = vpop.f32.mrf.mxu0
        %950 = vmatprep.mubr.f32.mxu0 0.0
        %951 = vmatmul.mubr.f32.gmra.mxu0 %v856
        %v952 = vpop.f32.mrf.mxu0
        %v953 = vadd.f32 0.0, %v952
        %v954 = vpop.f32.mrf.mxu0
        %955 = vmatprep.mubr.f32.mxu0 0.0
        %956 = vmatmul.mubr.f32.gmra.mxu0 %v859
        %v957 = vpop.f32.mrf.mxu0
        %v958 = vadd.f32 0.0, %v957
        %v959 = vpop.f32.mrf.mxu0
        %960 = vmatprep.mubr.f32.mxu0 0.0
        %961 = vmatmul.mubr.f32.gmra.mxu0 %v862
        %v962 = vpop.f32.mrf.mxu0
        %v963 = vadd.f32 0.0, %v962
        %v964 = vpop.f32.mrf.mxu0
        %965 = vmatprep.mubr.f32.mxu0 0.0
        %966 = vmatmul.mubr.f32.gmra.mxu0 %v865
        %v967 = vpop.f32.mrf.mxu0
        %v968 = vadd.f32 0.0, %v967
        %v969 = vpop.f32.mrf.mxu0
        %970 = vmatprep.mubr.f32.mxu0 0.0
        %971 = vmatmul.mubr.f32.gmra.mxu0 %v868
        %v972 = vpop.f32.mrf.mxu0
        %v973 = vadd.f32 0.0, %v972
        %v974 = vpop.f32.mrf.mxu0
        %975 = vmatprep.mubr.f32.mxu0 0.0
        %976 = vmatmul.mubr.f32.gmra.mxu0 %v871
        %v977 = vpop.f32.mrf.mxu0
        %v978 = vadd.f32 0.0, %v977
        %v979 = vpop.f32.mrf.mxu0
        %980 = vdwg.mxu0
        %v981 = vadd.f32 %v827, %v943
        %v982 = vadd.f32 %v828, %v948
        %v983 = vadd.f32 %v829, %v953
        %v984 = vadd.f32 %v830, %v958
        %v985 = vadd.f32 %v831, %v963
        %v986 = vadd.f32 %v832, %v968
        %v987 = vadd.f32 %v833, %v973
        %v988 = vadd.f32 %v834, %v978
        %s989 = scalar_lea.vmem %s1, 256
        %v990 = vld [vmem:[%s989] sm:$0xff]
        %v991 = vld [vmem:[%s989 + $0x8] sm:$0xff]
        %v992 = vld [vmem:[%s989 + $0x10] sm:$0xff]
        %v993 = vld [vmem:[%s989 + $0x18] sm:$0xff]
        %v994 = vld [vmem:[%s989 + $0x20] sm:$0xff]
        %v995 = vld [vmem:[%s989 + $0x28] sm:$0xff]
        %v996 = vld [vmem:[%s989 + $0x30] sm:$0xff]
        %v997 = vld [vmem:[%s989 + $0x38] sm:$0xff]
        %s998 = scalar_lea.vmem %s366, 128 [#allocation2]
        %v999 = vld [vmem:[%s998] sm:$0xff]
        %v1000 = vld [vmem:[%s998 + $0x8] sm:$0xff]
        %v1001 = vld [vmem:[%s998 + $0x10] sm:$0xff]
        %v1002 = vld [vmem:[%s998 + $0x18] sm:$0xf]
        %v1004 = vsel %vm415, %v990, 0
        %v1007 = vsel %vm415, %v991, 0
        %v1010 = vsel %vm415, %v992, 0
        %v1013 = vsel %vm415, %v993, 0
        %v1016 = vsel %vm415, %v994, 0
        %v1019 = vsel %vm415, %v995, 0
        %v1022 = vsel %vm415, %v996, 0
        %v1025 = vsel %vm415, %v997, 0
        %v1028 = vsel %vm440, %v1002, 0
        %1030 = vmatprep.subr.mxu0 0.0
        %1031 = vmatpush1.msra.mxu0 0.0
        %1032 = vmatprep.subr.mxu0 0.0
        %1033 = vmatpush1.msra.mxu0 0.0
        %1034 = vmatprep.subr.mxu0 0.0
        %1035 = vmatpush1.msra.mxu0 0.0
        %1036 = vmatprep.subr.mxu0 0.0
        %1037 = vmatpush1.msra.mxu0 0.0
        %1038 = vmatprep.subr.mxu0 0.0
        %1039 = vmatpush1.msra.mxu0 0.0
        %1040 = vmatprep.subr.mxu0 0.0
        %1041 = vmatpush1.msra.mxu0 0.0
        %1042 = vmatprep.subr.mxu0 0.0
        %1043 = vmatpush1.msra.mxu0 0.0
        %1044 = vmatprep.subr.mxu0 0.0
        %1045 = vmatpush1.msra.mxu0 0.0
        %1046 = vmatprep.subr.mxu0 0.0
        %1047 = vmatpush1.msra.mxu0 0.0
        %1048 = vmatprep.subr.mxu0 0.0
        %1049 = vmatpush1.msra.mxu0 0.0
        %1050 = vmatprep.subr.mxu0 0.0
        %1051 = vmatpush1.msra.mxu0 0.0
        %1052 = vmatprep.subr.mxu0 0.0
        %1053 = vmatpush1.msra.mxu0 0.0
        %1054 = vmatprep.subr.mxu0 0.0
        %1055 = vmatpush1.msra.mxu0 %v1028
        %1056 = vmatprep.subr.mxu0 0.0
        %1057 = vmatpush1.msra.mxu0 %v1001
        %1058 = vmatprep.subr.mxu0 0.0
        %1059 = vmatpush1.msra.mxu0 %v1000
        %1060 = vmatprep.subr.mxu0 0.0
        %1061 = vmatpush1.msra.mxu0 %v999
        %1062 = vmatprep.subr.mxu0 0.0
        %1063 = vmatpush2.msra.mxu0 0.0
        %1064 = vmatprep.subr.mxu0 0.0
        %1065 = vmatpush2.msra.mxu0 0.0
        %1066 = vmatprep.subr.mxu0 0.0
        %1067 = vmatpush2.msra.mxu0 0.0
        %1068 = vmatprep.subr.mxu0 0.0
        %1069 = vmatpush2.msra.mxu0 0.0
        %1070 = vmatprep.subr.mxu0 0.0
        %1071 = vmatpush2.msra.mxu0 0.0
        %1072 = vmatprep.subr.mxu0 0.0
        %1073 = vmatpush2.msra.mxu0 0.0
        %1074 = vmatprep.subr.mxu0 0.0
        %1075 = vmatpush2.msra.mxu0 0.0
        %1076 = vmatprep.subr.mxu0 0.0
        %1077 = vmatpush2.msra.mxu0 0.0
        %1078 = vmatprep.subr.mxu0 0.0
        %1079 = vmatpush2.msra.mxu0 0.0
        %1080 = vmatprep.subr.mxu0 0.0
        %1081 = vmatpush2.msra.mxu0 0.0
        %1082 = vmatprep.subr.mxu0 0.0
        %1083 = vmatpush2.msra.mxu0 0.0
        %1084 = vmatprep.subr.mxu0 0.0
        %1085 = vmatpush2.msra.mxu0 0.0
        %1086 = vmatprep.subr.mxu0 0.0
        %1087 = vmatpush2.msra.mxu0 0.0
        %1088 = vmatprep.subr.mxu0 0.0
        %1089 = vmatpush2.msra.mxu0 0.0
        %1090 = vmatprep.subr.mxu0 0.0
        %1091 = vmatpush2.msra.mxu0 0.0
        %1092 = vmatprep.subr.mxu0 0.0
        %1093 = vmatpush2.msra.mxu0 0.0
        %1094 = vmatprep.mubr.f32.mxu0 0.0
        %1095 = vmatmul.mubr.f32.gmra.mxu0 %v1004
        %v1096 = vpop.f32.mrf.mxu0
        %v1097 = vadd.f32 0.0, %v1096
        %v1098 = vpop.f32.mrf.mxu0
        %1099 = vmatprep.mubr.f32.mxu0 0.0
        %1100 = vmatmul.mubr.f32.gmra.mxu0 %v1007
        %v1101 = vpop.f32.mrf.mxu0
        %v1102 = vadd.f32 0.0, %v1101
        %v1103 = vpop.f32.mrf.mxu0
        %1104 = vmatprep.mubr.f32.mxu0 0.0
        %1105 = vmatmul.mubr.f32.gmra.mxu0 %v1010
        %v1106 = vpop.f32.mrf.mxu0
        %v1107 = vadd.f32 0.0, %v1106
        %v1108 = vpop.f32.mrf.mxu0
        %1109 = vmatprep.mubr.f32.mxu0 0.0
        %1110 = vmatmul.mubr.f32.gmra.mxu0 %v1013
        %v1111 = vpop.f32.mrf.mxu0
        %v1112 = vadd.f32 0.0, %v1111
        %v1113 = vpop.f32.mrf.mxu0
        %1114 = vmatprep.mubr.f32.mxu0 0.0
        %1115 = vmatmul.mubr.f32.gmra.mxu0 %v1016
        %v1116 = vpop.f32.mrf.mxu0
        %v1117 = vadd.f32 0.0, %v1116
        %v1118 = vpop.f32.mrf.mxu0
        %1119 = vmatprep.mubr.f32.mxu0 0.0
        %1120 = vmatmul.mubr.f32.gmra.mxu0 %v1019
        %v1121 = vpop.f32.mrf.mxu0
        %v1122 = vadd.f32 0.0, %v1121
        %v1123 = vpop.f32.mrf.mxu0
        %1124 = vmatprep.mubr.f32.mxu0 0.0
        %1125 = vmatmul.mubr.f32.gmra.mxu0 %v1022
        %v1126 = vpop.f32.mrf.mxu0
        %v1127 = vadd.f32 0.0, %v1126
        %v1128 = vpop.f32.mrf.mxu0
        %1129 = vmatprep.mubr.f32.mxu0 0.0
        %1130 = vmatmul.mubr.f32.gmra.mxu0 %v1025
        %v1131 = vpop.f32.mrf.mxu0
        %v1132 = vadd.f32 0.0, %v1131
        %v1133 = vpop.f32.mrf.mxu0
        %1134 = vdwg.mxu0
        %v1135 = vadd.f32 %v981, %v1097
        %v1136 = vadd.f32 %v982, %v1102
        %v1137 = vadd.f32 %v983, %v1107
        %v1138 = vadd.f32 %v984, %v1112
        %v1139 = vadd.f32 %v985, %v1117
        %v1140 = vadd.f32 %v986, %v1122
        %v1141 = vadd.f32 %v987, %v1127
        %v1142 = vadd.f32 %v988, %v1132
        %s1143 = scalar_lea.vmem %s1, 320
        %v1144 = vld [vmem:[%s1143] sm:$0xff]
        %v1145 = vld [vmem:[%s1143 + $0x8] sm:$0xff]
        %v1146 = vld [vmem:[%s1143 + $0x10] sm:$0xff]
        %v1147 = vld [vmem:[%s1143 + $0x18] sm:$0xff]
        %v1148 = vld [vmem:[%s1143 + $0x20] sm:$0xff]
        %v1149 = vld [vmem:[%s1143 + $0x28] sm:$0xff]
        %v1150 = vld [vmem:[%s1143 + $0x30] sm:$0xff]
        %v1151 = vld [vmem:[%s1143 + $0x38] sm:$0xff]
        %s1152 = scalar_lea.vmem %s366, 160 [#allocation2]
        %v1153 = vld [vmem:[%s1152] sm:$0xff]
        %v1154 = vld [vmem:[%s1152 + $0x8] sm:$0xff]
        %v1155 = vld [vmem:[%s1152 + $0x10] sm:$0xff]
        %v1156 = vld [vmem:[%s1152 + $0x18] sm:$0xf]
        %v1158 = vsel %vm415, %v1144, 0
        %v1161 = vsel %vm415, %v1145, 0
        %v1164 = vsel %vm415, %v1146, 0
        %v1167 = vsel %vm415, %v1147, 0
        %v1170 = vsel %vm415, %v1148, 0
        %v1173 = vsel %vm415, %v1149, 0
        %v1176 = vsel %vm415, %v1150, 0
        %v1179 = vsel %vm415, %v1151, 0
        %v1182 = vsel %vm440, %v1156, 0
        %1184 = vmatprep.subr.mxu0 0.0
        %1185 = vmatpush1.msra.mxu0 0.0
        %1186 = vmatprep.subr.mxu0 0.0
        %1187 = vmatpush1.msra.mxu0 0.0
        %1188 = vmatprep.subr.mxu0 0.0
        %1189 = vmatpush1.msra.mxu0 0.0
        %1190 = vmatprep.subr.mxu0 0.0
        %1191 = vmatpush1.msra.mxu0 0.0
        %1192 = vmatprep.subr.mxu0 0.0
        %1193 = vmatpush1.msra.mxu0 0.0
        %1194 = vmatprep.subr.mxu0 0.0
        %1195 = vmatpush1.msra.mxu0 0.0
        %1196 = vmatprep.subr.mxu0 0.0
        %1197 = vmatpush1.msra.mxu0 0.0
        %1198 = vmatprep.subr.mxu0 0.0
        %1199 = vmatpush1.msra.mxu0 0.0
        %1200 = vmatprep.subr.mxu0 0.0
        %1201 = vmatpush1.msra.mxu0 0.0
        %1202 = vmatprep.subr.mxu0 0.0
        %1203 = vmatpush1.msra.mxu0 0.0
        %1204 = vmatprep.subr.mxu0 0.0
        %1205 = vmatpush1.msra.mxu0 0.0
        %1206 = vmatprep.subr.mxu0 0.0
        %1207 = vmatpush1.msra.mxu0 0.0
        %1208 = vmatprep.subr.mxu0 0.0
        %1209 = vmatpush1.msra.mxu0 %v1182
        %1210 = vmatprep.subr.mxu0 0.0
        %1211 = vmatpush1.msra.mxu0 %v1155
        %1212 = vmatprep.subr.mxu0 0.0
        %1213 = vmatpush1.msra.mxu0 %v1154
        %1214 = vmatprep.subr.mxu0 0.0
        %1215 = vmatpush1.msra.mxu0 %v1153
        %1216 = vmatprep.subr.mxu0 0.0
        %1217 = vmatpush2.msra.mxu0 0.0
        %1218 = vmatprep.subr.mxu0 0.0
        %1219 = vmatpush2.msra.mxu0 0.0
        %1220 = vmatprep.subr.mxu0 0.0
        %1221 = vmatpush2.msra.mxu0 0.0
        %1222 = vmatprep.subr.mxu0 0.0
        %1223 = vmatpush2.msra.mxu0 0.0
        %1224 = vmatprep.subr.mxu0 0.0
        %1225 = vmatpush2.msra.mxu0 0.0
        %1226 = vmatprep.subr.mxu0 0.0
        %1227 = vmatpush2.msra.mxu0 0.0
        %1228 = vmatprep.subr.mxu0 0.0
        %1229 = vmatpush2.msra.mxu0 0.0
        %1230 = vmatprep.subr.mxu0 0.0
        %1231 = vmatpush2.msra.mxu0 0.0
        %1232 = vmatprep.subr.mxu0 0.0
        %1233 = vmatpush2.msra.mxu0 0.0
        %1234 = vmatprep.subr.mxu0 0.0
        %1235 = vmatpush2.msra.mxu0 0.0
        %1236 = vmatprep.subr.mxu0 0.0
        %1237 = vmatpush2.msra.mxu0 0.0
        %1238 = vmatprep.subr.mxu0 0.0
        %1239 = vmatpush2.msra.mxu0 0.0
        %1240 = vmatprep.subr.mxu0 0.0
        %1241 = vmatpush2.msra.mxu0 0.0
        %1242 = vmatprep.subr.mxu0 0.0
        %1243 = vmatpush2.msra.mxu0 0.0
        %1244 = vmatprep.subr.mxu0 0.0
        %1245 = vmatpush2.msra.mxu0 0.0
        %1246 = vmatprep.subr.mxu0 0.0
        %1247 = vmatpush2.msra.mxu0 0.0
        %1248 = vmatprep.mubr.f32.mxu0 0.0
        %1249 = vmatmul.mubr.f32.gmra.mxu0 %v1158
        %v1250 = vpop.f32.mrf.mxu0
        %v1251 = vadd.f32 0.0, %v1250
        %v1252 = vpop.f32.mrf.mxu0
        %1253 = vmatprep.mubr.f32.mxu0 0.0
        %1254 = vmatmul.mubr.f32.gmra.mxu0 %v1161
        %v1255 = vpop.f32.mrf.mxu0
        %v1256 = vadd.f32 0.0, %v1255
        %v1257 = vpop.f32.mrf.mxu0
        %1258 = vmatprep.mubr.f32.mxu0 0.0
        %1259 = vmatmul.mubr.f32.gmra.mxu0 %v1164
        %v1260 = vpop.f32.mrf.mxu0
        %v1261 = vadd.f32 0.0, %v1260
        %v1262 = vpop.f32.mrf.mxu0
        %1263 = vmatprep.mubr.f32.mxu0 0.0
        %1264 = vmatmul.mubr.f32.gmra.mxu0 %v1167
        %v1265 = vpop.f32.mrf.mxu0
        %v1266 = vadd.f32 0.0, %v1265
        %v1267 = vpop.f32.mrf.mxu0
        %1268 = vmatprep.mubr.f32.mxu0 0.0
        %1269 = vmatmul.mubr.f32.gmra.mxu0 %v1170
        %v1270 = vpop.f32.mrf.mxu0
        %v1271 = vadd.f32 0.0, %v1270
        %v1272 = vpop.f32.mrf.mxu0
        %1273 = vmatprep.mubr.f32.mxu0 0.0
        %1274 = vmatmul.mubr.f32.gmra.mxu0 %v1173
        %v1275 = vpop.f32.mrf.mxu0
        %v1276 = vadd.f32 0.0, %v1275
        %v1277 = vpop.f32.mrf.mxu0
        %1278 = vmatprep.mubr.f32.mxu0 0.0
        %1279 = vmatmul.mubr.f32.gmra.mxu0 %v1176
        %v1280 = vpop.f32.mrf.mxu0
        %v1281 = vadd.f32 0.0, %v1280
        %v1282 = vpop.f32.mrf.mxu0
        %1283 = vmatprep.mubr.f32.mxu0 0.0
        %1284 = vmatmul.mubr.f32.gmra.mxu0 %v1179
        %v1285 = vpop.f32.mrf.mxu0
        %v1286 = vadd.f32 0.0, %v1285
        %v1287 = vpop.f32.mrf.mxu0
        %1288 = vdwg.mxu0
        %v1289 = vadd.f32 %v1135, %v1251
        %v1290 = vadd.f32 %v1136, %v1256
        %v1291 = vadd.f32 %v1137, %v1261
        %v1292 = vadd.f32 %v1138, %v1266
        %v1293 = vadd.f32 %v1139, %v1271
        %v1294 = vadd.f32 %v1140, %v1276
        %v1295 = vadd.f32 %v1141, %v1281
        %v1296 = vadd.f32 %v1142, %v1286
        %s1297 = scalar_lea.vmem %s1, 384
        %v1298 = vld [vmem:[%s1297] sm:$0xff]
        %v1299 = vld [vmem:[%s1297 + $0x8] sm:$0xff]
        %v1300 = vld [vmem:[%s1297 + $0x10] sm:$0xff]
        %v1301 = vld [vmem:[%s1297 + $0x18] sm:$0xff]
        %v1302 = vld [vmem:[%s1297 + $0x20] sm:$0xff]
        %v1303 = vld [vmem:[%s1297 + $0x28] sm:$0xff]
        %v1304 = vld [vmem:[%s1297 + $0x30] sm:$0xff]
        %v1305 = vld [vmem:[%s1297 + $0x38] sm:$0xff]
        %s1306 = scalar_lea.vmem %s366, 192 [#allocation2]
        %v1307 = vld [vmem:[%s1306] sm:$0xff]
        %v1308 = vld [vmem:[%s1306 + $0x8] sm:$0xff]
        %v1309 = vld [vmem:[%s1306 + $0x10] sm:$0xff]
        %v1310 = vld [vmem:[%s1306 + $0x18] sm:$0xf]
        %v1312 = vsel %vm415, %v1298, 0
        %v1315 = vsel %vm415, %v1299, 0
        %v1318 = vsel %vm415, %v1300, 0
        %v1321 = vsel %vm415, %v1301, 0
        %v1324 = vsel %vm415, %v1302, 0
        %v1327 = vsel %vm415, %v1303, 0
        %v1330 = vsel %vm415, %v1304, 0
        %v1333 = vsel %vm415, %v1305, 0
        %v1336 = vsel %vm440, %v1310, 0
        %1338 = vmatprep.subr.mxu0 0.0
        %1339 = vmatpush1.msra.mxu0 0.0
        %1340 = vmatprep.subr.mxu0 0.0
        %1341 = vmatpush1.msra.mxu0 0.0
        %1342 = vmatprep.subr.mxu0 0.0
        %1343 = vmatpush1.msra.mxu0 0.0
        %1344 = vmatprep.subr.mxu0 0.0
        %1345 = vmatpush1.msra.mxu0 0.0
        %1346 = vmatprep.subr.mxu0 0.0
        %1347 = vmatpush1.msra.mxu0 0.0
        %1348 = vmatprep.subr.mxu0 0.0
        %1349 = vmatpush1.msra.mxu0 0.0
        %1350 = vmatprep.subr.mxu0 0.0
        %1351 = vmatpush1.msra.mxu0 0.0
        %1352 = vmatprep.subr.mxu0 0.0
        %1353 = vmatpush1.msra.mxu0 0.0
        %1354 = vmatprep.subr.mxu0 0.0
        %1355 = vmatpush1.msra.mxu0 0.0
        %1356 = vmatprep.subr.mxu0 0.0
        %1357 = vmatpush1.msra.mxu0 0.0
        %1358 = vmatprep.subr.mxu0 0.0
        %1359 = vmatpush1.msra.mxu0 0.0
        %1360 = vmatprep.subr.mxu0 0.0
        %1361 = vmatpush1.msra.mxu0 0.0
        %1362 = vmatprep.subr.mxu0 0.0
        %1363 = vmatpush1.msra.mxu0 %v1336
        %1364 = vmatprep.subr.mxu0 0.0
        %1365 = vmatpush1.msra.mxu0 %v1309
        %1366 = vmatprep.subr.mxu0 0.0
        %1367 = vmatpush1.msra.mxu0 %v1308
        %1368 = vmatprep.subr.mxu0 0.0
        %1369 = vmatpush1.msra.mxu0 %v1307
        %1370 = vmatprep.subr.mxu0 0.0
        %1371 = vmatpush2.msra.mxu0 0.0
        %1372 = vmatprep.subr.mxu0 0.0
        %1373 = vmatpush2.msra.mxu0 0.0
        %1374 = vmatprep.subr.mxu0 0.0
        %1375 = vmatpush2.msra.mxu0 0.0
        %1376 = vmatprep.subr.mxu0 0.0
        %1377 = vmatpush2.msra.mxu0 0.0
        %1378 = vmatprep.subr.mxu0 0.0
        %1379 = vmatpush2.msra.mxu0 0.0
        %1380 = vmatprep.subr.mxu0 0.0
        %1381 = vmatpush2.msra.mxu0 0.0
        %1382 = vmatprep.subr.mxu0 0.0
        %1383 = vmatpush2.msra.mxu0 0.0
        %1384 = vmatprep.subr.mxu0 0.0
        %1385 = vmatpush2.msra.mxu0 0.0
        %1386 = vmatprep.subr.mxu0 0.0
        %1387 = vmatpush2.msra.mxu0 0.0
        %1388 = vmatprep.subr.mxu0 0.0
        %1389 = vmatpush2.msra.mxu0 0.0
        %1390 = vmatprep.subr.mxu0 0.0
        %1391 = vmatpush2.msra.mxu0 0.0
        %1392 = vmatprep.subr.mxu0 0.0
        %1393 = vmatpush2.msra.mxu0 0.0
        %1394 = vmatprep.subr.mxu0 0.0
        %1395 = vmatpush2.msra.mxu0 0.0
        %1396 = vmatprep.subr.mxu0 0.0
        %1397 = vmatpush2.msra.mxu0 0.0
        %1398 = vmatprep.subr.mxu0 0.0
        %1399 = vmatpush2.msra.mxu0 0.0
        %1400 = vmatprep.subr.mxu0 0.0
        %1401 = vmatpush2.msra.mxu0 0.0
        %1402 = vmatprep.mubr.f32.mxu0 0.0
        %1403 = vmatmul.mubr.f32.gmra.mxu0 %v1312
        %v1404 = vpop.f32.mrf.mxu0
        %v1405 = vadd.f32 0.0, %v1404
        %v1406 = vpop.f32.mrf.mxu0
        %1407 = vmatprep.mubr.f32.mxu0 0.0
        %1408 = vmatmul.mubr.f32.gmra.mxu0 %v1315
        %v1409 = vpop.f32.mrf.mxu0
        %v1410 = vadd.f32 0.0, %v1409
        %v1411 = vpop.f32.mrf.mxu0
        %1412 = vmatprep.mubr.f32.mxu0 0.0
        %1413 = vmatmul.mubr.f32.gmra.mxu0 %v1318
        %v1414 = vpop.f32.mrf.mxu0
        %v1415 = vadd.f32 0.0, %v1414
        %v1416 = vpop.f32.mrf.mxu0
        %1417 = vmatprep.mubr.f32.mxu0 0.0
        %1418 = vmatmul.mubr.f32.gmra.mxu0 %v1321
        %v1419 = vpop.f32.mrf.mxu0
        %v1420 = vadd.f32 0.0, %v1419
        %v1421 = vpop.f32.mrf.mxu0
        %1422 = vmatprep.mubr.f32.mxu0 0.0
        %1423 = vmatmul.mubr.f32.gmra.mxu0 %v1324
        %v1424 = vpop.f32.mrf.mxu0
        %v1425 = vadd.f32 0.0, %v1424
        %v1426 = vpop.f32.mrf.mxu0
        %1427 = vmatprep.mubr.f32.mxu0 0.0
        %1428 = vmatmul.mubr.f32.gmra.mxu0 %v1327
        %v1429 = vpop.f32.mrf.mxu0
        %v1430 = vadd.f32 0.0, %v1429
        %v1431 = vpop.f32.mrf.mxu0
        %1432 = vmatprep.mubr.f32.mxu0 0.0
        %1433 = vmatmul.mubr.f32.gmra.mxu0 %v1330
        %v1434 = vpop.f32.mrf.mxu0
        %v1435 = vadd.f32 0.0, %v1434
        %v1436 = vpop.f32.mrf.mxu0
        %1437 = vmatprep.mubr.f32.mxu0 0.0
        %1438 = vmatmul.mubr.f32.gmra.mxu0 %v1333
        %v1439 = vpop.f32.mrf.mxu0
        %v1440 = vadd.f32 0.0, %v1439
        %v1441 = vpop.f32.mrf.mxu0
        %1442 = vdwg.mxu0
        %v1443 = vadd.f32 %v1289, %v1405
        %v1444 = vadd.f32 %v1290, %v1410
        %v1445 = vadd.f32 %v1291, %v1415
        %v1446 = vadd.f32 %v1292, %v1420
        %v1447 = vadd.f32 %v1293, %v1425
        %v1448 = vadd.f32 %v1294, %v1430
        %v1449 = vadd.f32 %v1295, %v1435
        %v1450 = vadd.f32 %v1296, %v1440
        %s1451 = scalar_lea.vmem %s1, 448
        %v1452 = vld [vmem:[%s1451] sm:$0xff]
        %v1453 = vld [vmem:[%s1451 + $0x8] sm:$0xff]
        %v1454 = vld [vmem:[%s1451 + $0x10] sm:$0xff]
        %v1455 = vld [vmem:[%s1451 + $0x18] sm:$0xff]
        %v1456 = vld [vmem:[%s1451 + $0x20] sm:$0xff]
        %v1457 = vld [vmem:[%s1451 + $0x28] sm:$0xff]
        %v1458 = vld [vmem:[%s1451 + $0x30] sm:$0xff]
        %v1459 = vld [vmem:[%s1451 + $0x38] sm:$0xff]
        %s1460 = scalar_lea.vmem %s366, 224 [#allocation2]
        %v1461 = vld [vmem:[%s1460] sm:$0xff]
        %v1462 = vld [vmem:[%s1460 + $0x8] sm:$0xff]
        %v1463 = vld [vmem:[%s1460 + $0x10] sm:$0xff]
        %v1464 = vld [vmem:[%s1460 + $0x18] sm:$0xf]
        %v1466 = vsel %vm415, %v1452, 0
        %v1469 = vsel %vm415, %v1453, 0
        %v1472 = vsel %vm415, %v1454, 0
        %v1475 = vsel %vm415, %v1455, 0
        %v1478 = vsel %vm415, %v1456, 0
        %v1481 = vsel %vm415, %v1457, 0
        %v1484 = vsel %vm415, %v1458, 0
        %v1487 = vsel %vm415, %v1459, 0
        %v1490 = vsel %vm440, %v1464, 0
        %1492 = vmatprep.subr.mxu0 0.0
        %1493 = vmatpush1.msra.mxu0 0.0
        %1494 = vmatprep.subr.mxu0 0.0
        %1495 = vmatpush1.msra.mxu0 0.0
        %1496 = vmatprep.subr.mxu0 0.0
        %1497 = vmatpush1.msra.mxu0 0.0
        %1498 = vmatprep.subr.mxu0 0.0
        %1499 = vmatpush1.msra.mxu0 0.0
        %1500 = vmatprep.subr.mxu0 0.0
        %1501 = vmatpush1.msra.mxu0 0.0
        %1502 = vmatprep.subr.mxu0 0.0
        %1503 = vmatpush1.msra.mxu0 0.0
        %1504 = vmatprep.subr.mxu0 0.0
        %1505 = vmatpush1.msra.mxu0 0.0
        %1506 = vmatprep.subr.mxu0 0.0
        %1507 = vmatpush1.msra.mxu0 0.0
        %1508 = vmatprep.subr.mxu0 0.0
        %1509 = vmatpush1.msra.mxu0 0.0
        %1510 = vmatprep.subr.mxu0 0.0
        %1511 = vmatpush1.msra.mxu0 0.0
        %1512 = vmatprep.subr.mxu0 0.0
        %1513 = vmatpush1.msra.mxu0 0.0
        %1514 = vmatprep.subr.mxu0 0.0
        %1515 = vmatpush1.msra.mxu0 0.0
        %1516 = vmatprep.subr.mxu0 0.0
        %1517 = vmatpush1.msra.mxu0 %v1490
        %1518 = vmatprep.subr.mxu0 0.0
        %1519 = vmatpush1.msra.mxu0 %v1463
        %1520 = vmatprep.subr.mxu0 0.0
        %1521 = vmatpush1.msra.mxu0 %v1462
        %1522 = vmatprep.subr.mxu0 0.0
        %1523 = vmatpush1.msra.mxu0 %v1461
        %1524 = vmatprep.subr.mxu0 0.0
        %1525 = vmatpush2.msra.mxu0 0.0
        %1526 = vmatprep.subr.mxu0 0.0
        %1527 = vmatpush2.msra.mxu0 0.0
        %1528 = vmatprep.subr.mxu0 0.0
        %1529 = vmatpush2.msra.mxu0 0.0
        %1530 = vmatprep.subr.mxu0 0.0
        %1531 = vmatpush2.msra.mxu0 0.0
        %1532 = vmatprep.subr.mxu0 0.0
        %1533 = vmatpush2.msra.mxu0 0.0
        %1534 = vmatprep.subr.mxu0 0.0
        %1535 = vmatpush2.msra.mxu0 0.0
        %1536 = vmatprep.subr.mxu0 0.0
        %1537 = vmatpush2.msra.mxu0 0.0
        %1538 = vmatprep.subr.mxu0 0.0
        %1539 = vmatpush2.msra.mxu0 0.0
        %1540 = vmatprep.subr.mxu0 0.0
        %1541 = vmatpush2.msra.mxu0 0.0
        %1542 = vmatprep.subr.mxu0 0.0
        %1543 = vmatpush2.msra.mxu0 0.0
        %1544 = vmatprep.subr.mxu0 0.0
        %1545 = vmatpush2.msra.mxu0 0.0
        %1546 = vmatprep.subr.mxu0 0.0
        %1547 = vmatpush2.msra.mxu0 0.0
        %1548 = vmatprep.subr.mxu0 0.0
        %1549 = vmatpush2.msra.mxu0 0.0
        %1550 = vmatprep.subr.mxu0 0.0
        %1551 = vmatpush2.msra.mxu0 0.0
        %1552 = vmatprep.subr.mxu0 0.0
        %1553 = vmatpush2.msra.mxu0 0.0
        %1554 = vmatprep.subr.mxu0 0.0
        %1555 = vmatpush2.msra.mxu0 0.0
        %1556 = vmatprep.mubr.f32.mxu0 0.0
        %1557 = vmatmul.mubr.f32.gmra.mxu0 %v1466
        %v1558 = vpop.f32.mrf.mxu0
        %v1559 = vadd.f32 0.0, %v1558
        %v1560 = vpop.f32.mrf.mxu0
        %1561 = vmatprep.mubr.f32.mxu0 0.0
        %1562 = vmatmul.mubr.f32.gmra.mxu0 %v1469
        %v1563 = vpop.f32.mrf.mxu0
        %v1564 = vadd.f32 0.0, %v1563
        %v1565 = vpop.f32.mrf.mxu0
        %1566 = vmatprep.mubr.f32.mxu0 0.0
        %1567 = vmatmul.mubr.f32.gmra.mxu0 %v1472
        %v1568 = vpop.f32.mrf.mxu0
        %v1569 = vadd.f32 0.0, %v1568
        %v1570 = vpop.f32.mrf.mxu0
        %1571 = vmatprep.mubr.f32.mxu0 0.0
        %1572 = vmatmul.mubr.f32.gmra.mxu0 %v1475
        %v1573 = vpop.f32.mrf.mxu0
        %v1574 = vadd.f32 0.0, %v1573
        %v1575 = vpop.f32.mrf.mxu0
        %1576 = vmatprep.mubr.f32.mxu0 0.0
        %1577 = vmatmul.mubr.f32.gmra.mxu0 %v1478
        %v1578 = vpop.f32.mrf.mxu0
        %v1579 = vadd.f32 0.0, %v1578
        %v1580 = vpop.f32.mrf.mxu0
        %1581 = vmatprep.mubr.f32.mxu0 0.0
        %1582 = vmatmul.mubr.f32.gmra.mxu0 %v1481
        %v1583 = vpop.f32.mrf.mxu0
        %v1584 = vadd.f32 0.0, %v1583
        %v1585 = vpop.f32.mrf.mxu0
        %1586 = vmatprep.mubr.f32.mxu0 0.0
        %1587 = vmatmul.mubr.f32.gmra.mxu0 %v1484
        %v1588 = vpop.f32.mrf.mxu0
        %v1589 = vadd.f32 0.0, %v1588
        %v1590 = vpop.f32.mrf.mxu0
        %1591 = vmatprep.mubr.f32.mxu0 0.0
        %1592 = vmatmul.mubr.f32.gmra.mxu0 %v1487
        %v1593 = vpop.f32.mrf.mxu0
        %v1594 = vadd.f32 0.0, %v1593
        %v1595 = vpop.f32.mrf.mxu0
        %1596 = vdwg.mxu0
        %v1597 = vadd.f32 %v1443, %v1559
        %v1598 = vadd.f32 %v1444, %v1564
        %v1599 = vadd.f32 %v1445, %v1569
        %v1600 = vadd.f32 %v1446, %v1574
        %v1601 = vadd.f32 %v1447, %v1579
        %v1602 = vadd.f32 %v1448, %v1584
        %v1603 = vadd.f32 %v1449, %v1589
        %v1604 = vadd.f32 %v1450, %v1594
        %s1605 = scalar_lea.vmem %s1, 512
        %v1606 = vld [vmem:[%s1605] sm:$0xff]
        %v1607 = vld [vmem:[%s1605 + $0x8] sm:$0xff]
        %v1608 = vld [vmem:[%s1605 + $0x10] sm:$0xff]
        %v1609 = vld [vmem:[%s1605 + $0x18] sm:$0xff]
        %v1610 = vld [vmem:[%s1605 + $0x20] sm:$0xff]
        %v1611 = vld [vmem:[%s1605 + $0x28] sm:$0xff]
        %v1612 = vld [vmem:[%s1605 + $0x30] sm:$0xff]
        %v1613 = vld [vmem:[%s1605 + $0x38] sm:$0xff]
        %s1614 = scalar_lea.vmem %s366, 256 [#allocation2]
        %v1615 = vld [vmem:[%s1614] sm:$0xff]
        %v1616 = vld [vmem:[%s1614 + $0x8] sm:$0xff]
        %v1617 = vld [vmem:[%s1614 + $0x10] sm:$0xff]
        %v1618 = vld [vmem:[%s1614 + $0x18] sm:$0xf]
        %v1620 = vsel %vm415, %v1606, 0
        %v1623 = vsel %vm415, %v1607, 0
        %v1626 = vsel %vm415, %v1608, 0
        %v1629 = vsel %vm415, %v1609, 0
        %v1632 = vsel %vm415, %v1610, 0
        %v1635 = vsel %vm415, %v1611, 0
        %v1638 = vsel %vm415, %v1612, 0
        %v1641 = vsel %vm415, %v1613, 0
        %v1644 = vsel %vm440, %v1618, 0
        %1646 = vmatprep.subr.mxu0 0.0
        %1647 = vmatpush1.msra.mxu0 0.0
        %1648 = vmatprep.subr.mxu0 0.0
        %1649 = vmatpush1.msra.mxu0 0.0
        %1650 = vmatprep.subr.mxu0 0.0
        %1651 = vmatpush1.msra.mxu0 0.0
        %1652 = vmatprep.subr.mxu0 0.0
        %1653 = vmatpush1.msra.mxu0 0.0
        %1654 = vmatprep.subr.mxu0 0.0
        %1655 = vmatpush1.msra.mxu0 0.0
        %1656 = vmatprep.subr.mxu0 0.0
        %1657 = vmatpush1.msra.mxu0 0.0
        %1658 = vmatprep.subr.mxu0 0.0
        %1659 = vmatpush1.msra.mxu0 0.0
        %1660 = vmatprep.subr.mxu0 0.0
        %1661 = vmatpush1.msra.mxu0 0.0
        %1662 = vmatprep.subr.mxu0 0.0
        %1663 = vmatpush1.msra.mxu0 0.0
        %1664 = vmatprep.subr.mxu0 0.0
        %1665 = vmatpush1.msra.mxu0 0.0
        %1666 = vmatprep.subr.mxu0 0.0
        %1667 = vmatpush1.msra.mxu0 0.0
        %1668 = vmatprep.subr.mxu0 0.0
        %1669 = vmatpush1.msra.mxu0 0.0
        %1670 = vmatprep.subr.mxu0 0.0
        %1671 = vmatpush1.msra.mxu0 %v1644
        %1672 = vmatprep.subr.mxu0 0.0
        %1673 = vmatpush1.msra.mxu0 %v1617
        %1674 = vmatprep.subr.mxu0 0.0
        %1675 = vmatpush1.msra.mxu0 %v1616
        %1676 = vmatprep.subr.mxu0 0.0
        %1677 = vmatpush1.msra.mxu0 %v1615
        %1678 = vmatprep.subr.mxu0 0.0
        %1679 = vmatpush2.msra.mxu0 0.0
        %1680 = vmatprep.subr.mxu0 0.0
        %1681 = vmatpush2.msra.mxu0 0.0
        %1682 = vmatprep.subr.mxu0 0.0
        %1683 = vmatpush2.msra.mxu0 0.0
        %1684 = vmatprep.subr.mxu0 0.0
        %1685 = vmatpush2.msra.mxu0 0.0
        %1686 = vmatprep.subr.mxu0 0.0
        %1687 = vmatpush2.msra.mxu0 0.0
        %1688 = vmatprep.subr.mxu0 0.0
        %1689 = vmatpush2.msra.mxu0 0.0
        %1690 = vmatprep.subr.mxu0 0.0
        %1691 = vmatpush2.msra.mxu0 0.0
        %1692 = vmatprep.subr.mxu0 0.0
        %1693 = vmatpush2.msra.mxu0 0.0
        %1694 = vmatprep.subr.mxu0 0.0
        %1695 = vmatpush2.msra.mxu0 0.0
        %1696 = vmatprep.subr.mxu0 0.0
        %1697 = vmatpush2.msra.mxu0 0.0
        %1698 = vmatprep.subr.mxu0 0.0
        %1699 = vmatpush2.msra.mxu0 0.0
        %1700 = vmatprep.subr.mxu0 0.0
        %1701 = vmatpush2.msra.mxu0 0.0
        %1702 = vmatprep.subr.mxu0 0.0
        %1703 = vmatpush2.msra.mxu0 0.0
        %1704 = vmatprep.subr.mxu0 0.0
        %1705 = vmatpush2.msra.mxu0 0.0
        %1706 = vmatprep.subr.mxu0 0.0
        %1707 = vmatpush2.msra.mxu0 0.0
        %1708 = vmatprep.subr.mxu0 0.0
        %1709 = vmatpush2.msra.mxu0 0.0
        %1710 = vmatprep.mubr.f32.mxu0 0.0
        %1711 = vmatmul.mubr.f32.gmra.mxu0 %v1620
        %v1712 = vpop.f32.mrf.mxu0
        %v1713 = vadd.f32 0.0, %v1712
        %v1714 = vpop.f32.mrf.mxu0
        %1715 = vmatprep.mubr.f32.mxu0 0.0
        %1716 = vmatmul.mubr.f32.gmra.mxu0 %v1623
        %v1717 = vpop.f32.mrf.mxu0
        %v1718 = vadd.f32 0.0, %v1717
        %v1719 = vpop.f32.mrf.mxu0
        %1720 = vmatprep.mubr.f32.mxu0 0.0
        %1721 = vmatmul.mubr.f32.gmra.mxu0 %v1626
        %v1722 = vpop.f32.mrf.mxu0
        %v1723 = vadd.f32 0.0, %v1722
        %v1724 = vpop.f32.mrf.mxu0
        %1725 = vmatprep.mubr.f32.mxu0 0.0
        %1726 = vmatmul.mubr.f32.gmra.mxu0 %v1629
        %v1727 = vpop.f32.mrf.mxu0
        %v1728 = vadd.f32 0.0, %v1727
        %v1729 = vpop.f32.mrf.mxu0
        %1730 = vmatprep.mubr.f32.mxu0 0.0
        %1731 = vmatmul.mubr.f32.gmra.mxu0 %v1632
        %v1732 = vpop.f32.mrf.mxu0
        %v1733 = vadd.f32 0.0, %v1732
        %v1734 = vpop.f32.mrf.mxu0
        %1735 = vmatprep.mubr.f32.mxu0 0.0
        %1736 = vmatmul.mubr.f32.gmra.mxu0 %v1635
        %v1737 = vpop.f32.mrf.mxu0
        %v1738 = vadd.f32 0.0, %v1737
        %v1739 = vpop.f32.mrf.mxu0
        %1740 = vmatprep.mubr.f32.mxu0 0.0
        %1741 = vmatmul.mubr.f32.gmra.mxu0 %v1638
        %v1742 = vpop.f32.mrf.mxu0
        %v1743 = vadd.f32 0.0, %v1742
        %v1744 = vpop.f32.mrf.mxu0
        %1745 = vmatprep.mubr.f32.mxu0 0.0
        %1746 = vmatmul.mubr.f32.gmra.mxu0 %v1641
        %v1747 = vpop.f32.mrf.mxu0
        %v1748 = vadd.f32 0.0, %v1747
        %v1749 = vpop.f32.mrf.mxu0
        %1750 = vdwg.mxu0
        %v1751 = vadd.f32 %v1597, %v1713
        %v1752 = vadd.f32 %v1598, %v1718
        %v1753 = vadd.f32 %v1599, %v1723
        %v1754 = vadd.f32 %v1600, %v1728
        %v1755 = vadd.f32 %v1601, %v1733
        %v1756 = vadd.f32 %v1602, %v1738
        %v1757 = vadd.f32 %v1603, %v1743
        %v1758 = vadd.f32 %v1604, %v1748
        %v1759 = vld [vmem:[%s2] sm:$0xff]
        %v1760 = vld [vmem:[%s2 + $0x8] sm:$0xff]
        %v1761 = vld [vmem:[%s2 + $0x10] sm:$0xff]
        %v1762 = vld [vmem:[%s2 + $0x18] sm:$0xff]
        %v1763 = vld [vmem:[%s2 + $0x20] sm:$0xff]
        %v1764 = vld [vmem:[%s2 + $0x28] sm:$0xff]
        %v1765 = vld [vmem:[%s2 + $0x30] sm:$0xff]
        %v1766 = vld [vmem:[%s2 + $0x38] sm:$0xff]
        %1768 = vset.pattern.permute.xlu0 0
        %1769 = vperm.xlu0 %1768, %v1759
        %v1770 = vpop.permute.xlu0 %1769
        %1773 = vset.pattern.permute.xlu0 0
        %1774 = vperm.xlu0 %1773, %v1760
        %v1775 = vpop.permute.xlu0 %1774
        %1778 = vset.pattern.permute.xlu0 0
        %1779 = vperm.xlu0 %1778, %v1761
        %v1780 = vpop.permute.xlu0 %1779
        %1783 = vset.pattern.permute.xlu0 0
        %1784 = vperm.xlu0 %1783, %v1762
        %v1785 = vpop.permute.xlu0 %1784
        %1788 = vset.pattern.permute.xlu0 0
        %1789 = vperm.xlu0 %1788, %v1763
        %v1790 = vpop.permute.xlu0 %1789
        %1793 = vset.pattern.permute.xlu0 0
        %1794 = vperm.xlu0 %1793, %v1764
        %v1795 = vpop.permute.xlu0 %1794
        %1798 = vset.pattern.permute.xlu0 0
        %1799 = vperm.xlu0 %1798, %v1765
        %v1800 = vpop.permute.xlu0 %1799
        %1803 = vset.pattern.permute.xlu0 0
        %1804 = vperm.xlu0 %1803, %v1766
        %v1805 = vpop.permute.xlu0 %1804
        %v1807 = vmul.f32 %v1751, %v1770
        %v1808 = vmul.f32 %v1752, %v1775
        %v1809 = vmul.f32 %v1753, %v1780
        %v1810 = vmul.f32 %v1754, %v1785
        %v1811 = vmul.f32 %v1755, %v1790
        %v1812 = vmul.f32 %v1756, %v1795
        %v1813 = vmul.f32 %v1757, %v1800
        %v1814 = vmul.f32 %v1758, %v1805
        %v1815 = vld [vmem:[%s3] sm:$0xff]
        %v1816 = vld [vmem:[%s3 + $0x8] sm:$0xff]
        %v1817 = vld [vmem:[%s3 + $0x10] sm:$0xff]
        %v1818 = vld [vmem:[%s3 + $0x18] sm:$0xff]
        %v1819 = vld [vmem:[%s3 + $0x20] sm:$0xff]
        %v1820 = vld [vmem:[%s3 + $0x28] sm:$0xff]
        %v1821 = vld [vmem:[%s3 + $0x30] sm:$0xff]
        %v1822 = vld [vmem:[%s3 + $0x38] sm:$0xff]
        %1824 = vset.pattern.permute.xlu0 0
        %1825 = vperm.xlu0 %1824, %v1815
        %v1826 = vpop.permute.xlu0 %1825
        %1829 = vset.pattern.permute.xlu0 0
        %1830 = vperm.xlu0 %1829, %v1816
        %v1831 = vpop.permute.xlu0 %1830
        %1834 = vset.pattern.permute.xlu0 0
        %1835 = vperm.xlu0 %1834, %v1817
        %v1836 = vpop.permute.xlu0 %1835
        %1839 = vset.pattern.permute.xlu0 0
        %1840 = vperm.xlu0 %1839, %v1818
        %v1841 = vpop.permute.xlu0 %1840
        %1844 = vset.pattern.permute.xlu0 0
        %1845 = vperm.xlu0 %1844, %v1819
        %v1846 = vpop.permute.xlu0 %1845
        %1849 = vset.pattern.permute.xlu0 0
        %1850 = vperm.xlu0 %1849, %v1820
        %v1851 = vpop.permute.xlu0 %1850
        %1854 = vset.pattern.permute.xlu0 0
        %1855 = vperm.xlu0 %1854, %v1821
        %v1856 = vpop.permute.xlu0 %1855
        %1859 = vset.pattern.permute.xlu0 0
        %1860 = vperm.xlu0 %1859, %v1822
        %v1861 = vpop.permute.xlu0 %1860
        %v1863 = vadd.f32 %v1807, %v1826
        %v1864 = vadd.f32 %v1808, %v1831
        %v1865 = vadd.f32 %v1809, %v1836
        %v1866 = vadd.f32 %v1810, %v1841
        %v1867 = vadd.f32 %v1811, %v1846
        %v1868 = vadd.f32 %v1812, %v1851
        %v1869 = vadd.f32 %v1813, %v1856
        %v1870 = vadd.f32 %v1814, %v1861
        %v1871 = vmax.f32 %v1863, 0.0
        %v1872 = vmax.f32 %v1864, 0.0
        %v1873 = vmax.f32 %v1865, 0.0
        %v1874 = vmax.f32 %v1866, 0.0
        %v1875 = vmax.f32 %v1867, 0.0
        %v1876 = vmax.f32 %v1868, 0.0
        %v1877 = vmax.f32 %v1869, 0.0
        %v1878 = vmax.f32 %v1870, 0.0
        %vm1879 = vcmask 523264
        %1880 = vst.msk [vmem:[%s388] sm:$0xff] %vm1879, %v1871
        %1881 = vst.msk [vmem:[%s388 + $0x8] sm:$0xff] %vm1879, %v1872
        %1882 = vst.msk [vmem:[%s388 + $0x10] sm:$0xff] %vm1879, %v1873
        %1883 = vst.msk [vmem:[%s388 + $0x18] sm:$0xff] %vm1879, %v1874
        %1884 = vst.msk [vmem:[%s388 + $0x20] sm:$0xff] %vm1879, %v1875
        %1885 = vst.msk [vmem:[%s388 + $0x28] sm:$0xff] %vm1879, %v1876
        %1886 = vst.msk [vmem:[%s388 + $0x30] sm:$0xff] %vm1879, %v1877
        %1887 = vst.msk [vmem:[%s388 + $0x38] sm:$0xff] %vm1879, %v1878
        %s1888 = sand.u32 %s131, 1
        %s1889 = scalar_lea.sflag [#allocation4], %s1888
        %s1890 = sand.u32 %s131, 1
        %s1891 = smul.addr %s1890, 64
        %s1892 = scalar_lea.vmem [#allocation3], %s1891
        // Predicated region
        $region75: #{tpu_custom_call.1} parent=69 // pred_check
          %p1893 = pneg %p141
        $region76: #{tpu_custom_call.1} parent=69 // pred_check_branch
          %1895 = sbr.rel (%p1893) target = $region78
        $region77: #{tpu_custom_call.1} parent=69 // pred_region
          %s1897 = ssub.s32 1024, 1024
          %1898 = vsyncadd %s1889, %s1897
          %s1899 = smul.addr %s22, 8
          %s1900 = sadd.s32 %s23, %s1899
          %s1901 = smul.addr %s1900, 128
          %s1902 = scalar_lea.hbm %s4, %s1901
          %s1903 = sshll.u32 %s1892, 4
          %s1904 = int_to_ptr.vmem [resolvable:$true] %s1903
          %1909 = dma.vmem_to_hbm [thread:$0]  %s1904, 1024, %s1902, %s1889, 128, 128, 8
        $region78: #{tpu_custom_call.1} parent=69 // pred_fallthru
          _
      $region70: #{tpu_custom_call.1} parent=5 // pred_fallthru
        _
      %p1910 = scmp.le.s32.totalorder 2, %s13
      // Predicated region
      $region79: #{tpu_custom_call.1} parent=5 // pred_check
        %p1911 = pneg %p1910
      $region80: #{tpu_custom_call.1} parent=5 // pred_check_branch
        %1913 = sbr.rel (%p1911) target = $region82
      $region81: #{tpu_custom_call.1} parent=5 // pred_region
        %s1914 = ssub.s32 %s13, 2
        // Predicated region
        $region83: #{tpu_custom_call.1} parent=81 // pred_check
          %p1915 = pneg %p147
        $region84: #{tpu_custom_call.1} parent=81 // pred_check_branch
          %1917 = sbr.rel (%p1915) target = $region86
        $region85: #{tpu_custom_call.1} parent=81 // pred_region
          %s1918 = sand.u32 %s132, 1
          %s1919 = scalar_lea.sflag [#allocation4], %s1918
          %s1920 = sand.u32 %s132, 1
          %s1921 = smul.addr %s1920, 64
          %s1922 = scalar_lea.vmem [#allocation3], %s1921
          %1923 = dma.done %s1919, 1024
        $region86: #{tpu_custom_call.1} parent=81 // pred_fallthru
          _
      $region82: #{tpu_custom_call.1} parent=5 // pred_fallthru
        _
    $region6: #{tpu_custom_call.1} parent=1 // loop_footer
      %s17 = sadd.s32 1, %s13
    $region7: #{tpu_custom_call.1} parent=1 // loop_footer_branch
      %12 = sbr.rel target = $region3
    $region8: #{tpu_custom_call.1} parent=1 // loop_exit
      _
    %1924 = vsyncpa [#allocation4], 1
    %s1925 = scalar_lea.sflag [#allocation4], 1
    %1926 = vsyncpa %s1925, 1

</llo_original>
